<compile_context>
chip_gen: v6e
topology: v6e:2x2x1
jax: 0.10.0
libtpu: 0.0.40
codegen_flags: <defaults>
</compile_context>

<pallas_src>
import functools

import jax
import jax.numpy as jnp
import numpy as np
from jax import lax
from jax.experimental import pallas as pl
from jax.experimental.pallas import tpu as pltpu

# ----------------------------- model sizes ---------------------------------
NUM_ITEMS = 64
DIMS = 32          # args.d
L = 8              # args.L (sequence length)
KG_DIM = 50        # knowledge-graph embedding dim (PyTorch module)
KG_PAD = 64        # lane-padded KG dim used inside the kernel (zero pad, exact)
BATCH = 4
B_PAD = 8          # sublane-aligned batch used inside the kernel

# ---- 96-wide GRU slab row layout (all offsets multiples of 8) --------------
ROW_GI = 0                      # GI_tab = emb @ W_i + b_i_eff   (NUM_ITEMS rows)
ROW_WH = ROW_GI + NUM_ITEMS     # W_h (DIMS rows)
ROW_BH = ROW_WH + DIMS          # b_h masked: [0, 0, b_hh_n]     (1 row)
W96_ROWS = ROW_BH + 8           # pad to multiple of 8 -> 104

# ---- 64-wide head slab row layout ------------------------------------------
ROW_KG = 0                      # kg_bn (NUM_ITEMS rows, KG_PAD wide)
ROW_MLP_H = ROW_KG + NUM_ITEMS          # W_mlp_h   (DIMS rows)
ROW_KG_EFF = ROW_MLP_H + DIMS           # W_kg_eff  (KG_PAD rows)
ROW_B_EFF = ROW_KG_EFF + KG_PAD         # b_eff     (1 row)
ROW_FC = ROW_B_EFF + 8                  # W_fc      (2*DIMS rows)
ROW_B_FC = ROW_FC + 2 * DIMS            # b_fc      (1 row)
W64_ROWS = ROW_B_FC + 8                 # -> 240

_VMEM = functools.partial(pl.BlockSpec, memory_space=pltpu.MemorySpace.VMEM)


# --------------------------- fused forward kernel ---------------------------
def kerl_kernel(idx_ref, invlen_ref, w96_ref, w64_ref, out_ref):
    # idx_ref:    (L*B_PAD + B_PAD, 1) int32  [flattened time-major ids | lens]
    # invlen_ref: (B_PAD, 1) f32   precomputed 1/len (0 for dummy rows)
    # w96_ref:    (W96_ROWS, 3*DIMS) f32   GRU slab
    # w64_ref:    (W64_ROWS, 2*DIMS) f32   head slab (2*DIMS == NUM_ITEMS == KG_PAD)
    # out_ref:    (B_PAD, NUM_ITEMS) f32
    bp = out_ref.shape[0]
    n_items = out_ref.shape[1]
    d = DIMS
    lb = L * bp

    ids = idx_ref[0:lb, :]                                         # (L*Bp, 1)
    lengths = idx_ref[lb:lb + bp, :]                                # (Bp, 1)

    # one-hot of all (t, b) ids: iota + compare (no gather)
    item_iota = lax.broadcasted_iota(jnp.int32, (lb, n_items), 1)   # (L*Bp, N)
    onehot = (ids == item_iota).astype(jnp.float32)                 # (L*Bp, N)

    # GRU tables (static, 8-aligned slab slices)
    gi_tab = w96_ref[ROW_GI:ROW_GI + n_items, :]                    # (N, 3d)
    w_h = w96_ref[ROW_WH:ROW_WH + d, :]                             # (d, 3d)
    b_h_row = w96_ref[ROW_BH:ROW_BH + 1, :]                         # (1, 3d)
    b_h_b = jnp.broadcast_to(b_h_row, (bp, 3 * d))                  # hoisted

    # input transform for ALL steps: gi_all = onehot @ (emb @ W_i + b_i_eff)
    gi_all = jnp.dot(onehot, gi_tab, preferred_element_type=jnp.float32)  # (L*Bp, 3d)

    # GRU recurrence, fully unrolled; 1 matmul + 1 sigmoid + 1 tanh per step
    h = jnp.zeros((bp, d), jnp.float32)
    for t in range(L):
        gi = gi_all[t * bp:(t + 1) * bp, :]                         # (Bp, 3d)
        gh = jnp.dot(h, w_h, preferred_element_type=jnp.float32) + b_h_b
        rz = jax.nn.sigmoid(gi[:, :2 * d] + gh[:, :2 * d])          # fused r|z
        r = rz[:, :d]
        z = rz[:, d:]
        n = jnp.tanh(gi[:, 2 * d:] + r * gh[:, 2 * d:])
        h_new = (1.0 - z) * n + z * h
        # packed-sequence semantics: freeze hidden state once t >= length
        h = jnp.where(t < lengths, h_new, h)

    # get_kg: gather-as-matmul.  counts[b, i] = #occurrences of item i in seq b
    counts = onehot[0:bp, :]
    for t in range(1, L):
        counts = counts + onehot[t * bp:(t + 1) * bp, :]            # (Bp, N)

    kg_bn = w64_ref[ROW_KG:ROW_KG + n_items, :]                     # (N, KGP)
    batch_kg = jnp.dot(counts, kg_bn,
                       preferred_element_type=jnp.float32) * invlen_ref[...]

    # head: mlp_history pre-folded into W_kg_eff / b_eff
    w_mlp_h = w64_ref[ROW_MLP_H:ROW_MLP_H + d, :]                   # (d, 2d)
    w_kg_eff = w64_ref[ROW_KG_EFF:ROW_KG_EFF + KG_PAD, :]           # (KGP, 2d)
    b_eff = w64_ref[ROW_B_EFF:ROW_B_EFF + 1, :]                     # (1, 2d)
    w_fc = w64_ref[ROW_FC:ROW_FC + 2 * d, :]                        # (2d, N)
    b_fc = w64_ref[ROW_B_FC:ROW_B_FC + 1, :]                        # (1, N)

    pre = (jnp.dot(h, w_mlp_h, preferred_element_type=jnp.float32)
           + jnp.dot(batch_kg, w_kg_eff, preferred_element_type=jnp.float32)
           + b_eff)
    hidden = jnp.tanh(pre)
    out_ref[...] = jnp.dot(hidden, w_fc,
                           preferred_element_type=jnp.float32) + b_fc


# ------------------------------ full forward --------------------------------
@jax.jit
def kerl_forward(batch_sequences, train_len, kp):
    # pad batch to 8 sublane-aligned rows (dummy rows: seq=0, len=0, 1/len=0)
    seq_pad = jnp.zeros((B_PAD, L), jnp.int32).at[:BATCH].set(
        batch_sequences.astype(jnp.int32))
    len_pad = jnp.zeros((B_PAD,), jnp.int32).at[:BATCH].set(
        train_len.astype(jnp.int32))
    inv_pad = jnp.zeros((B_PAD,), jnp.float32).at[:BATCH].set(
        1.0 / train_len.astype(jnp.float32))

    # time-major flattened ids: row index = t*B_PAD + b; lengths appended
    seq_flat = jnp.transpose(seq_pad).reshape(L * B_PAD, 1)
    idx = jnp.concatenate([seq_flat, len_pad.reshape(B_PAD, 1)], axis=0)
    inv_len = inv_pad.reshape(B_PAD, 1)

    out = pl.pallas_call(
        kerl_kernel,
        out_shape=jax.ShapeDtypeStruct((B_PAD, NUM_ITEMS), jnp.float32),
        in_specs=[_VMEM()] * 4,
        out_specs=_VMEM(),
    )(idx, inv_len, kp["w96"], kp["w64"])

    return out[:BATCH, None, :]                 # torch.stack(probs, dim=1)


# -------------------------- pure-JAX reference -------------------------------
def kerl_reference(batch_sequences, train_len, raw):
    emb = raw["item_emb"][batch_sequences]                      # (B, L, d)
    d = DIMS
    h = jnp.zeros((BATCH, d), jnp.float32)
    lens = train_len.astype(jnp.int32)
    for t in range(L):
        x_t = emb[:, t, :]
        gi = x_t @ raw["w_ih"].T + raw["b_ih"]
        gh = h @ raw["w_hh"].T + raw["b_hh"]
        r = jax.nn.sigmoid(gi[:, :d] + gh[:, :d])
        z = jax.nn.sigmoid(gi[:, d:2 * d] + gh[:, d:2 * d])
        n = jnp.tanh(gi[:, 2 * d:] + r * gh[:, 2 * d:])
        h_new = (1.0 - z) * n + z * h
        h = jnp.where((t < lens)[:, None], h_new, h)
    kg = raw["kg_map"]
    mean = kg.mean(axis=0, keepdims=True)
    var = ((kg - mean) ** 2).mean(axis=0, keepdims=True)
    kg_bn = (kg - mean) / jnp.sqrt(var + 1e-5)
    seq_kg = kg_bn[batch_sequences]
    batch_kg = seq_kg.sum(axis=1) / train_len.astype(jnp.float32)[:, None]
    hist = batch_kg @ raw["w_hist"].T + raw["b_hist"]
    mlp_in = jnp.concatenate([h, batch_kg, hist], axis=1)
    hidden = jnp.tanh(mlp_in @ raw["w_mlp"].T + raw["b_mlp"])
    out = hidden @ raw["w_fc"].T + raw["b_fc"]
    return out[:, None, :]


# ------------------------------ parameters -----------------------------------
def make_params(key):
    ks = jax.random.split(key, 12)

    def rnd(k, shape, scale=0.1):
        return (scale * jax.random.normal(k, shape)).astype(jnp.float32)

    # raw PyTorch-layout parameters (used by the reference)
    raw = dict(
        item_emb=rnd(ks[0], (NUM_ITEMS, DIMS)),
        kg_map=rnd(ks[1], (NUM_ITEMS, KG_DIM), scale=1.0),
        w_ih=rnd(ks[2], (3 * DIMS, DIMS)),      # nn.GRU weight_ih, gates [r;z;n]
        w_hh=rnd(ks[3], (3 * DIMS, DIMS)),
        b_ih=rnd(ks[4], (3 * DIMS,)),
        b_hh=rnd(ks[5], (3 * DIMS,)),
        w_hist=rnd(ks[6], (KG_DIM, KG_DIM)),    # nn.Linear(50, 50)
        b_hist=rnd(ks[7], (KG_DIM,)),
        w_mlp=rnd(ks[8], (2 * DIMS, DIMS + 2 * KG_DIM)),   # nn.Linear(d+100, 2d)
        b_mlp=rnd(ks[9], (2 * DIMS,)),
        w_fc=rnd(ks[10], (NUM_ITEMS, 2 * DIMS)),           # nn.Linear(2d, N)
        b_fc=rnd(ks[11], (NUM_ITEMS,)),
    )

    d = DIMS

    # ---- GRU slab (96-wide) -------------------------------------------------
    w_i = raw["w_ih"].T                                     # (d, 3d) [r|z|n]
    w_h = raw["w_hh"].T                                     # (d, 3d)
    # fold b_hh's r/z components into the input bias; keep b_hh_n separate
    b_i_eff = raw["b_ih"] + jnp.concatenate(
        [raw["b_hh"][:2 * d], jnp.zeros((d,), jnp.float32)])
    gi_tab = raw["item_emb"] @ w_i + b_i_eff[None, :]       # (N, 3d)
    b_h_masked = jnp.concatenate(
        [jnp.zeros((2 * d,), jnp.float32), raw["b_hh"][2 * d:]])[None, :]

    w96 = jnp.zeros((W96_ROWS, 3 * d), jnp.float32)
    w96 = w96.at[ROW_GI:ROW_GI + NUM_ITEMS].set(gi_tab)
    w96 = w96.at[ROW_WH:ROW_WH + d].set(w_h)
    w96 = w96.at[ROW_BH:ROW_BH + 1].set(b_h_masked)

    # ---- head slab (64-wide): BN(kg) precomputed, mlp_history folded --------
    kg = raw["kg_map"]
    mean = kg.mean(axis=0, keepdims=True)
    var = ((kg - mean) ** 2).mean(axis=0, keepdims=True)
    kg_bn = (kg - mean) / jnp.sqrt(var + 1e-5)              # (N, 50)
    kg_bn_pad = jnp.pad(kg_bn, ((0, 0), (0, KG_PAD - KG_DIM)))

    w_mlp = raw["w_mlp"]                                    # (2d, d+100)
    w_mlp_h = w_mlp[:, :d].T                                # (d, 2d)
    w_mlp_kg = w_mlp[:, d:d + KG_DIM].T                     # (50, 2d)
    w_mlp_hi = w_mlp[:, d + KG_DIM:].T                      # (50, 2d)
    w_hist_t = raw["w_hist"].T                              # (50, 50)
    w_kg_eff = w_mlp_kg + w_hist_t @ w_mlp_hi               # (50, 2d)
    w_kg_eff_pad = jnp.pad(w_kg_eff, ((0, KG_PAD - KG_DIM), (0, 0)))
    b_eff = raw["b_mlp"][None, :] + raw["b_hist"][None, :] @ w_mlp_hi

    w64 = jnp.zeros((W64_ROWS, 2 * d), jnp.float32)
    w64 = w64.at[ROW_KG:ROW_KG + NUM_ITEMS].set(kg_bn_pad)
    w64 = w64.at[ROW_MLP_H:ROW_MLP_H + d].set(w_mlp_h)
    w64 = w64.at[ROW_KG_EFF:ROW_KG_EFF + KG_PAD].set(w_kg_eff_pad)
    w64 = w64.at[ROW_B_EFF:ROW_B_EFF + 1].set(b_eff)
    w64 = w64.at[ROW_FC:ROW_FC + 2 * d].set(raw["w_fc"].T)
    w64 = w64.at[ROW_B_FC:ROW_B_FC + 1].set(raw["b_fc"][None, :])

    kp = dict(w96=w96, w64=w64)
    return raw, kp


# --------------------------------- main --------------------------------------
if __name__ == "__main__":
    key = jax.random.PRNGKey(0)
    kparam_key, kseq, klen = jax.random.split(key, 3)
    raw, kparams = make_params(kparam_key)

    batch_sequences = jax.random.randint(kseq, (BATCH, L), 0, NUM_ITEMS, dtype=jnp.int32)
    train_len = jax.random.randint(klen, (BATCH,), 1, L + 1, dtype=jnp.int32)

    out = kerl_forward(batch_sequences, train_len, kparams)
    out = jax.block_until_ready(out)

    ref = kerl_reference(batch_sequences, train_len, raw)
    assert out.shape == (BATCH, 1, NUM_ITEMS)
    np.testing.assert_allclose(np.asarray(out), np.asarray(ref), rtol=1e-4, atol=1e-4)

    print("KERNEL_OK")
</pallas_src>

<mosaic_0001>
module attributes {stable_mosaic.version = 11 : i64} {
  func.func @kerl_kernel(%arg0: memref<72x1xi32, #tpu.memory_space<vmem>>, %arg1: memref<8x1xf32, #tpu.memory_space<vmem>>, %arg2: memref<104x96xf32, #tpu.memory_space<vmem>>, %arg3: memref<240x64xf32, #tpu.memory_space<vmem>>, %arg4: memref<8x64xf32, #tpu.memory_space<vmem>>) attributes {dimension_semantics = [], scalar_prefetch = 0 : i64, scratch_operands = 0 : i64, tpu.core_type = #tpu.core_type<tc>} {
    %c0 = arith.constant 0 : index
    %c0_0 = arith.constant 0 : index
    %0 = vector.load %arg0[%c0, %c0_0] : memref<72x1xi32, #tpu.memory_space<vmem>>, vector<64x1xi32>
    %c64 = arith.constant 64 : index
    %c0_1 = arith.constant 0 : index
    %1 = vector.load %arg0[%c64, %c0_1] : memref<72x1xi32, #tpu.memory_space<vmem>>, vector<8x1xi32>
    %2 = tpu.iota {dimensions = array<i32: 1>} : vector<64x64xi32>
    %3 = vector.broadcast %0 : vector<64x1xi32> to vector<64x64xi32>
    %4 = arith.cmpi eq, %3, %2 : vector<64x64xi32>
    %5 = arith.extui %4 : vector<64x64xi1> to vector<64x64xi32>
    %6 = arith.sitofp %5 : vector<64x64xi32> to vector<64x64xf32>
    %c0_2 = arith.constant 0 : index
    %c0_3 = arith.constant 0 : index
    %7 = vector.load %arg2[%c0_2, %c0_3] : memref<104x96xf32, #tpu.memory_space<vmem>>, vector<64x96xf32>
    %c64_4 = arith.constant 64 : index
    %c0_5 = arith.constant 0 : index
    %8 = vector.load %arg2[%c64_4, %c0_5] : memref<104x96xf32, #tpu.memory_space<vmem>>, vector<32x96xf32>
    %c96 = arith.constant 96 : index
    %c0_6 = arith.constant 0 : index
    %9 = vector.load %arg2[%c96, %c0_6] : memref<104x96xf32, #tpu.memory_space<vmem>>, vector<1x96xf32>
    %10 = vector.shape_cast %9 : vector<1x96xf32> to vector<1x96xf32>
    %11 = vector.broadcast %10 : vector<1x96xf32> to vector<8x96xf32>
    %cst = arith.constant dense<0.000000e+00> : vector<64x96xf32>
    %12 = tpu.matmul %6, %7, %cst {dimension_numbers = #tpu.dot_dimension_numbers<[1], [0], [0], [1], [0, 0, 1, 1], [], []>} : vector<64x64xf32>, vector<64x96xf32>, vector<64x96xf32> -> vector<64x96xf32>
    %cst_7 = arith.constant 0.000000e+00 : f32
    %13 = vector.broadcast %cst_7 : f32 to vector<8x32xf32>
    %14 = vector.extract_strided_slice %12 {offsets = [0, 0], sizes = [8, 96], strides = [1, 1]} : vector<64x96xf32> to vector<8x96xf32>
    %cst_8 = arith.constant dense<0.000000e+00> : vector<8x96xf32>
    %15 = tpu.matmul %13, %8, %cst_8 {dimension_numbers = #tpu.dot_dimension_numbers<[1], [0], [0], [1], [0, 0, 1, 1], [], []>} : vector<8x32xf32>, vector<32x96xf32>, vector<8x96xf32> -> vector<8x96xf32>
    %16 = arith.addf %15, %11 : vector<8x96xf32>
    %17 = vector.extract_strided_slice %14 {offsets = [0, 0], sizes = [8, 64], strides = [1, 1]} : vector<8x96xf32> to vector<8x64xf32>
    %18 = vector.extract_strided_slice %16 {offsets = [0, 0], sizes = [8, 64], strides = [1, 1]} : vector<8x96xf32> to vector<8x64xf32>
    %19 = arith.addf %17, %18 : vector<8x64xf32>
    %20 = arith.negf %19 : vector<8x64xf32>
    %21 = math.exp %20 : vector<8x64xf32>
    %cst_9 = arith.constant 1.000000e+00 : f32
    %22 = vector.broadcast %cst_9 : f32 to vector<8x64xf32>
    %23 = arith.addf %22, %21 : vector<8x64xf32>
    %24 = arith.divf %22, %23 : vector<8x64xf32>
    %25 = vector.extract_strided_slice %24 {offsets = [0, 0], sizes = [8, 32], strides = [1, 1]} : vector<8x64xf32> to vector<8x32xf32>
    %26 = vector.extract_strided_slice %24 {offsets = [0, 32], sizes = [8, 32], strides = [1, 1]} : vector<8x64xf32> to vector<8x32xf32>
    %27 = vector.extract_strided_slice %14 {offsets = [0, 64], sizes = [8, 32], strides = [1, 1]} : vector<8x96xf32> to vector<8x32xf32>
    %28 = vector.extract_strided_slice %16 {offsets = [0, 64], sizes = [8, 32], strides = [1, 1]} : vector<8x96xf32> to vector<8x32xf32>
    %29 = arith.mulf %25, %28 : vector<8x32xf32>
    %30 = arith.addf %27, %29 : vector<8x32xf32>
    %31 = math.tanh %30 : vector<8x32xf32>
    %cst_10 = arith.constant 1.000000e+00 : f32
    %32 = vector.broadcast %cst_10 : f32 to vector<8x32xf32>
    %33 = arith.subf %32, %26 : vector<8x32xf32>
    %34 = arith.mulf %33, %31 : vector<8x32xf32>
    %35 = arith.mulf %26, %13 : vector<8x32xf32>
    %36 = arith.addf %34, %35 : vector<8x32xf32>
    %c0_i32 = arith.constant 0 : i32
    %37 = vector.broadcast %c0_i32 : i32 to vector<8x1xi32>
    %38 = arith.cmpi sgt, %1, %37 : vector<8x1xi32>
    %39 = vector.shape_cast %38 : vector<8x1xi1> to vector<8x1xi1>
    %40 = vector.broadcast %39 : vector<8x1xi1> to vector<8x32xi1>
    %41 = arith.select %40, %36, %13 : vector<8x32xi1>, vector<8x32xf32>
    %42 = vector.extract_strided_slice %12 {offsets = [8, 0], sizes = [8, 96], strides = [1, 1]} : vector<64x96xf32> to vector<8x96xf32>
    %cst_11 = arith.constant dense<0.000000e+00> : vector<8x96xf32>
    %43 = tpu.matmul %41, %8, %cst_11 {dimension_numbers = #tpu.dot_dimension_numbers<[1], [0], [0], [1], [0, 0, 1, 1], [], []>} : vector<8x32xf32>, vector<32x96xf32>, vector<8x96xf32> -> vector<8x96xf32>
    %44 = arith.addf %43, %11 : vector<8x96xf32>
    %45 = vector.extract_strided_slice %42 {offsets = [0, 0], sizes = [8, 64], strides = [1, 1]} : vector<8x96xf32> to vector<8x64xf32>
    %46 = vector.extract_strided_slice %44 {offsets = [0, 0], sizes = [8, 64], strides = [1, 1]} : vector<8x96xf32> to vector<8x64xf32>
    %47 = arith.addf %45, %46 : vector<8x64xf32>
    %48 = arith.negf %47 : vector<8x64xf32>
    %49 = math.exp %48 : vector<8x64xf32>
    %cst_12 = arith.constant 1.000000e+00 : f32
    %50 = vector.broadcast %cst_12 : f32 to vector<8x64xf32>
    %51 = arith.addf %50, %49 : vector<8x64xf32>
    %52 = arith.divf %50, %51 : vector<8x64xf32>
    %53 = vector.extract_strided_slice %52 {offsets = [0, 0], sizes = [8, 32], strides = [1, 1]} : vector<8x64xf32> to vector<8x32xf32>
    %54 = vector.extract_strided_slice %52 {offsets = [0, 32], sizes = [8, 32], strides = [1, 1]} : vector<8x64xf32> to vector<8x32xf32>
    %55 = vector.extract_strided_slice %42 {offsets = [0, 64], sizes = [8, 32], strides = [1, 1]} : vector<8x96xf32> to vector<8x32xf32>
    %56 = vector.extract_strided_slice %44 {offsets = [0, 64], sizes = [8, 32], strides = [1, 1]} : vector<8x96xf32> to vector<8x32xf32>
    %57 = arith.mulf %53, %56 : vector<8x32xf32>
    %58 = arith.addf %55, %57 : vector<8x32xf32>
    %59 = math.tanh %58 : vector<8x32xf32>
    %cst_13 = arith.constant 1.000000e+00 : f32
    %60 = vector.broadcast %cst_13 : f32 to vector<8x32xf32>
    %61 = arith.subf %60, %54 : vector<8x32xf32>
    %62 = arith.mulf %61, %59 : vector<8x32xf32>
    %63 = arith.mulf %54, %41 : vector<8x32xf32>
    %64 = arith.addf %62, %63 : vector<8x32xf32>
    %c1_i32 = arith.constant 1 : i32
    %65 = vector.broadcast %c1_i32 : i32 to vector<8x1xi32>
    %66 = arith.cmpi sgt, %1, %65 : vector<8x1xi32>
    %67 = vector.shape_cast %66 : vector<8x1xi1> to vector<8x1xi1>
    %68 = vector.broadcast %67 : vector<8x1xi1> to vector<8x32xi1>
    %69 = arith.select %68, %64, %41 : vector<8x32xi1>, vector<8x32xf32>
    %70 = vector.extract_strided_slice %12 {offsets = [16, 0], sizes = [8, 96], strides = [1, 1]} : vector<64x96xf32> to vector<8x96xf32>
    %cst_14 = arith.constant dense<0.000000e+00> : vector<8x96xf32>
    %71 = tpu.matmul %69, %8, %cst_14 {dimension_numbers = #tpu.dot_dimension_numbers<[1], [0], [0], [1], [0, 0, 1, 1], [], []>} : vector<8x32xf32>, vector<32x96xf32>, vector<8x96xf32> -> vector<8x96xf32>
    %72 = arith.addf %71, %11 : vector<8x96xf32>
    %73 = vector.extract_strided_slice %70 {offsets = [0, 0], sizes = [8, 64], strides = [1, 1]} : vector<8x96xf32> to vector<8x64xf32>
    %74 = vector.extract_strided_slice %72 {offsets = [0, 0], sizes = [8, 64], strides = [1, 1]} : vector<8x96xf32> to vector<8x64xf32>
    %75 = arith.addf %73, %74 : vector<8x64xf32>
    %76 = arith.negf %75 : vector<8x64xf32>
    %77 = math.exp %76 : vector<8x64xf32>
    %cst_15 = arith.constant 1.000000e+00 : f32
    %78 = vector.broadcast %cst_15 : f32 to vector<8x64xf32>
    %79 = arith.addf %78, %77 : vector<8x64xf32>
    %80 = arith.divf %78, %79 : vector<8x64xf32>
    %81 = vector.extract_strided_slice %80 {offsets = [0, 0], sizes = [8, 32], strides = [1, 1]} : vector<8x64xf32> to vector<8x32xf32>
    %82 = vector.extract_strided_slice %80 {offsets = [0, 32], sizes = [8, 32], strides = [1, 1]} : vector<8x64xf32> to vector<8x32xf32>
    %83 = vector.extract_strided_slice %70 {offsets = [0, 64], sizes = [8, 32], strides = [1, 1]} : vector<8x96xf32> to vector<8x32xf32>
    %84 = vector.extract_strided_slice %72 {offsets = [0, 64], sizes = [8, 32], strides = [1, 1]} : vector<8x96xf32> to vector<8x32xf32>
    %85 = arith.mulf %81, %84 : vector<8x32xf32>
    %86 = arith.addf %83, %85 : vector<8x32xf32>
    %87 = math.tanh %86 : vector<8x32xf32>
    %cst_16 = arith.constant 1.000000e+00 : f32
    %88 = vector.broadcast %cst_16 : f32 to vector<8x32xf32>
    %89 = arith.subf %88, %82 : vector<8x32xf32>
    %90 = arith.mulf %89, %87 : vector<8x32xf32>
    %91 = arith.mulf %82, %69 : vector<8x32xf32>
    %92 = arith.addf %90, %91 : vector<8x32xf32>
    %c2_i32 = arith.constant 2 : i32
    %93 = vector.broadcast %c2_i32 : i32 to vector<8x1xi32>
    %94 = arith.cmpi sgt, %1, %93 : vector<8x1xi32>
    %95 = vector.shape_cast %94 : vector<8x1xi1> to vector<8x1xi1>
    %96 = vector.broadcast %95 : vector<8x1xi1> to vector<8x32xi1>
    %97 = arith.select %96, %92, %69 : vector<8x32xi1>, vector<8x32xf32>
    %98 = vector.extract_strided_slice %12 {offsets = [24, 0], sizes = [8, 96], strides = [1, 1]} : vector<64x96xf32> to vector<8x96xf32>
    %cst_17 = arith.constant dense<0.000000e+00> : vector<8x96xf32>
    %99 = tpu.matmul %97, %8, %cst_17 {dimension_numbers = #tpu.dot_dimension_numbers<[1], [0], [0], [1], [0, 0, 1, 1], [], []>} : vector<8x32xf32>, vector<32x96xf32>, vector<8x96xf32> -> vector<8x96xf32>
    %100 = arith.addf %99, %11 : vector<8x96xf32>
    %101 = vector.extract_strided_slice %98 {offsets = [0, 0], sizes = [8, 64], strides = [1, 1]} : vector<8x96xf32> to vector<8x64xf32>
    %102 = vector.extract_strided_slice %100 {offsets = [0, 0], sizes = [8, 64], strides = [1, 1]} : vector<8x96xf32> to vector<8x64xf32>
    %103 = arith.addf %101, %102 : vector<8x64xf32>
    %104 = arith.negf %103 : vector<8x64xf32>
    %105 = math.exp %104 : vector<8x64xf32>
    %cst_18 = arith.constant 1.000000e+00 : f32
    %106 = vector.broadcast %cst_18 : f32 to vector<8x64xf32>
    %107 = arith.addf %106, %105 : vector<8x64xf32>
    %108 = arith.divf %106, %107 : vector<8x64xf32>
    %109 = vector.extract_strided_slice %108 {offsets = [0, 0], sizes = [8, 32], strides = [1, 1]} : vector<8x64xf32> to vector<8x32xf32>
    %110 = vector.extract_strided_slice %108 {offsets = [0, 32], sizes = [8, 32], strides = [1, 1]} : vector<8x64xf32> to vector<8x32xf32>
    %111 = vector.extract_strided_slice %98 {offsets = [0, 64], sizes = [8, 32], strides = [1, 1]} : vector<8x96xf32> to vector<8x32xf32>
    %112 = vector.extract_strided_slice %100 {offsets = [0, 64], sizes = [8, 32], strides = [1, 1]} : vector<8x96xf32> to vector<8x32xf32>
    %113 = arith.mulf %109, %112 : vector<8x32xf32>
    %114 = arith.addf %111, %113 : vector<8x32xf32>
    %115 = math.tanh %114 : vector<8x32xf32>
    %cst_19 = arith.constant 1.000000e+00 : f32
    %116 = vector.broadcast %cst_19 : f32 to vector<8x32xf32>
    %117 = arith.subf %116, %110 : vector<8x32xf32>
    %118 = arith.mulf %117, %115 : vector<8x32xf32>
    %119 = arith.mulf %110, %97 : vector<8x32xf32>
    %120 = arith.addf %118, %119 : vector<8x32xf32>
    %c3_i32 = arith.constant 3 : i32
    %121 = vector.broadcast %c3_i32 : i32 to vector<8x1xi32>
    %122 = arith.cmpi sgt, %1, %121 : vector<8x1xi32>
    %123 = vector.shape_cast %122 : vector<8x1xi1> to vector<8x1xi1>
    %124 = vector.broadcast %123 : vector<8x1xi1> to vector<8x32xi1>
    %125 = arith.select %124, %120, %97 : vector<8x32xi1>, vector<8x32xf32>
    %126 = vector.extract_strided_slice %12 {offsets = [32, 0], sizes = [8, 96], strides = [1, 1]} : vector<64x96xf32> to vector<8x96xf32>
    %cst_20 = arith.constant dense<0.000000e+00> : vector<8x96xf32>
    %127 = tpu.matmul %125, %8, %cst_20 {dimension_numbers = #tpu.dot_dimension_numbers<[1], [0], [0], [1], [0, 0, 1, 1], [], []>} : vector<8x32xf32>, vector<32x96xf32>, vector<8x96xf32> -> vector<8x96xf32>
    %128 = arith.addf %127, %11 : vector<8x96xf32>
    %129 = vector.extract_strided_slice %126 {offsets = [0, 0], sizes = [8, 64], strides = [1, 1]} : vector<8x96xf32> to vector<8x64xf32>
    %130 = vector.extract_strided_slice %128 {offsets = [0, 0], sizes = [8, 64], strides = [1, 1]} : vector<8x96xf32> to vector<8x64xf32>
    %131 = arith.addf %129, %130 : vector<8x64xf32>
    %132 = arith.negf %131 : vector<8x64xf32>
    %133 = math.exp %132 : vector<8x64xf32>
    %cst_21 = arith.constant 1.000000e+00 : f32
    %134 = vector.broadcast %cst_21 : f32 to vector<8x64xf32>
    %135 = arith.addf %134, %133 : vector<8x64xf32>
    %136 = arith.divf %134, %135 : vector<8x64xf32>
    %137 = vector.extract_strided_slice %136 {offsets = [0, 0], sizes = [8, 32], strides = [1, 1]} : vector<8x64xf32> to vector<8x32xf32>
    %138 = vector.extract_strided_slice %136 {offsets = [0, 32], sizes = [8, 32], strides = [1, 1]} : vector<8x64xf32> to vector<8x32xf32>
    %139 = vector.extract_strided_slice %126 {offsets = [0, 64], sizes = [8, 32], strides = [1, 1]} : vector<8x96xf32> to vector<8x32xf32>
    %140 = vector.extract_strided_slice %128 {offsets = [0, 64], sizes = [8, 32], strides = [1, 1]} : vector<8x96xf32> to vector<8x32xf32>
    %141 = arith.mulf %137, %140 : vector<8x32xf32>
    %142 = arith.addf %139, %141 : vector<8x32xf32>
    %143 = math.tanh %142 : vector<8x32xf32>
    %cst_22 = arith.constant 1.000000e+00 : f32
    %144 = vector.broadcast %cst_22 : f32 to vector<8x32xf32>
    %145 = arith.subf %144, %138 : vector<8x32xf32>
    %146 = arith.mulf %145, %143 : vector<8x32xf32>
    %147 = arith.mulf %138, %125 : vector<8x32xf32>
    %148 = arith.addf %146, %147 : vector<8x32xf32>
    %c4_i32 = arith.constant 4 : i32
    %149 = vector.broadcast %c4_i32 : i32 to vector<8x1xi32>
    %150 = arith.cmpi sgt, %1, %149 : vector<8x1xi32>
    %151 = vector.shape_cast %150 : vector<8x1xi1> to vector<8x1xi1>
    %152 = vector.broadcast %151 : vector<8x1xi1> to vector<8x32xi1>
    %153 = arith.select %152, %148, %125 : vector<8x32xi1>, vector<8x32xf32>
    %154 = vector.extract_strided_slice %12 {offsets = [40, 0], sizes = [8, 96], strides = [1, 1]} : vector<64x96xf32> to vector<8x96xf32>
    %cst_23 = arith.constant dense<0.000000e+00> : vector<8x96xf32>
    %155 = tpu.matmul %153, %8, %cst_23 {dimension_numbers = #tpu.dot_dimension_numbers<[1], [0], [0], [1], [0, 0, 1, 1], [], []>} : vector<8x32xf32>, vector<32x96xf32>, vector<8x96xf32> -> vector<8x96xf32>
    %156 = arith.addf %155, %11 : vector<8x96xf32>
    %157 = vector.extract_strided_slice %154 {offsets = [0, 0], sizes = [8, 64], strides = [1, 1]} : vector<8x96xf32> to vector<8x64xf32>
    %158 = vector.extract_strided_slice %156 {offsets = [0, 0], sizes = [8, 64], strides = [1, 1]} : vector<8x96xf32> to vector<8x64xf32>
    %159 = arith.addf %157, %158 : vector<8x64xf32>
    %160 = arith.negf %159 : vector<8x64xf32>
    %161 = math.exp %160 : vector<8x64xf32>
    %cst_24 = arith.constant 1.000000e+00 : f32
    %162 = vector.broadcast %cst_24 : f32 to vector<8x64xf32>
    %163 = arith.addf %162, %161 : vector<8x64xf32>
    %164 = arith.divf %162, %163 : vector<8x64xf32>
    %165 = vector.extract_strided_slice %164 {offsets = [0, 0], sizes = [8, 32], strides = [1, 1]} : vector<8x64xf32> to vector<8x32xf32>
    %166 = vector.extract_strided_slice %164 {offsets = [0, 32], sizes = [8, 32], strides = [1, 1]} : vector<8x64xf32> to vector<8x32xf32>
    %167 = vector.extract_strided_slice %154 {offsets = [0, 64], sizes = [8, 32], strides = [1, 1]} : vector<8x96xf32> to vector<8x32xf32>
    %168 = vector.extract_strided_slice %156 {offsets = [0, 64], sizes = [8, 32], strides = [1, 1]} : vector<8x96xf32> to vector<8x32xf32>
    %169 = arith.mulf %165, %168 : vector<8x32xf32>
    %170 = arith.addf %167, %169 : vector<8x32xf32>
    %171 = math.tanh %170 : vector<8x32xf32>
    %cst_25 = arith.constant 1.000000e+00 : f32
    %172 = vector.broadcast %cst_25 : f32 to vector<8x32xf32>
    %173 = arith.subf %172, %166 : vector<8x32xf32>
    %174 = arith.mulf %173, %171 : vector<8x32xf32>
    %175 = arith.mulf %166, %153 : vector<8x32xf32>
    %176 = arith.addf %174, %175 : vector<8x32xf32>
    %c5_i32 = arith.constant 5 : i32
    %177 = vector.broadcast %c5_i32 : i32 to vector<8x1xi32>
    %178 = arith.cmpi sgt, %1, %177 : vector<8x1xi32>
    %179 = vector.shape_cast %178 : vector<8x1xi1> to vector<8x1xi1>
    %180 = vector.broadcast %179 : vector<8x1xi1> to vector<8x32xi1>
    %181 = arith.select %180, %176, %153 : vector<8x32xi1>, vector<8x32xf32>
    %182 = vector.extract_strided_slice %12 {offsets = [48, 0], sizes = [8, 96], strides = [1, 1]} : vector<64x96xf32> to vector<8x96xf32>
    %cst_26 = arith.constant dense<0.000000e+00> : vector<8x96xf32>
    %183 = tpu.matmul %181, %8, %cst_26 {dimension_numbers = #tpu.dot_dimension_numbers<[1], [0], [0], [1], [0, 0, 1, 1], [], []>} : vector<8x32xf32>, vector<32x96xf32>, vector<8x96xf32> -> vector<8x96xf32>
    %184 = arith.addf %183, %11 : vector<8x96xf32>
    %185 = vector.extract_strided_slice %182 {offsets = [0, 0], sizes = [8, 64], strides = [1, 1]} : vector<8x96xf32> to vector<8x64xf32>
    %186 = vector.extract_strided_slice %184 {offsets = [0, 0], sizes = [8, 64], strides = [1, 1]} : vector<8x96xf32> to vector<8x64xf32>
    %187 = arith.addf %185, %186 : vector<8x64xf32>
    %188 = arith.negf %187 : vector<8x64xf32>
    %189 = math.exp %188 : vector<8x64xf32>
    %cst_27 = arith.constant 1.000000e+00 : f32
    %190 = vector.broadcast %cst_27 : f32 to vector<8x64xf32>
    %191 = arith.addf %190, %189 : vector<8x64xf32>
    %192 = arith.divf %190, %191 : vector<8x64xf32>
    %193 = vector.extract_strided_slice %192 {offsets = [0, 0], sizes = [8, 32], strides = [1, 1]} : vector<8x64xf32> to vector<8x32xf32>
    %194 = vector.extract_strided_slice %192 {offsets = [0, 32], sizes = [8, 32], strides = [1, 1]} : vector<8x64xf32> to vector<8x32xf32>
    %195 = vector.extract_strided_slice %182 {offsets = [0, 64], sizes = [8, 32], strides = [1, 1]} : vector<8x96xf32> to vector<8x32xf32>
    %196 = vector.extract_strided_slice %184 {offsets = [0, 64], sizes = [8, 32], strides = [1, 1]} : vector<8x96xf32> to vector<8x32xf32>
    %197 = arith.mulf %193, %196 : vector<8x32xf32>
    %198 = arith.addf %195, %197 : vector<8x32xf32>
    %199 = math.tanh %198 : vector<8x32xf32>
    %cst_28 = arith.constant 1.000000e+00 : f32
    %200 = vector.broadcast %cst_28 : f32 to vector<8x32xf32>
    %201 = arith.subf %200, %194 : vector<8x32xf32>
    %202 = arith.mulf %201, %199 : vector<8x32xf32>
    %203 = arith.mulf %194, %181 : vector<8x32xf32>
    %204 = arith.addf %202, %203 : vector<8x32xf32>
    %c6_i32 = arith.constant 6 : i32
    %205 = vector.broadcast %c6_i32 : i32 to vector<8x1xi32>
    %206 = arith.cmpi sgt, %1, %205 : vector<8x1xi32>
    %207 = vector.shape_cast %206 : vector<8x1xi1> to vector<8x1xi1>
    %208 = vector.broadcast %207 : vector<8x1xi1> to vector<8x32xi1>
    %209 = arith.select %208, %204, %181 : vector<8x32xi1>, vector<8x32xf32>
    %210 = vector.extract_strided_slice %12 {offsets = [56, 0], sizes = [8, 96], strides = [1, 1]} : vector<64x96xf32> to vector<8x96xf32>
    %cst_29 = arith.constant dense<0.000000e+00> : vector<8x96xf32>
    %211 = tpu.matmul %209, %8, %cst_29 {dimension_numbers = #tpu.dot_dimension_numbers<[1], [0], [0], [1], [0, 0, 1, 1], [], []>} : vector<8x32xf32>, vector<32x96xf32>, vector<8x96xf32> -> vector<8x96xf32>
    %212 = arith.addf %211, %11 : vector<8x96xf32>
    %213 = vector.extract_strided_slice %210 {offsets = [0, 0], sizes = [8, 64], strides = [1, 1]} : vector<8x96xf32> to vector<8x64xf32>
    %214 = vector.extract_strided_slice %212 {offsets = [0, 0], sizes = [8, 64], strides = [1, 1]} : vector<8x96xf32> to vector<8x64xf32>
    %215 = arith.addf %213, %214 : vector<8x64xf32>
    %216 = arith.negf %215 : vector<8x64xf32>
    %217 = math.exp %216 : vector<8x64xf32>
    %cst_30 = arith.constant 1.000000e+00 : f32
    %218 = vector.broadcast %cst_30 : f32 to vector<8x64xf32>
    %219 = arith.addf %218, %217 : vector<8x64xf32>
    %220 = arith.divf %218, %219 : vector<8x64xf32>
    %221 = vector.extract_strided_slice %220 {offsets = [0, 0], sizes = [8, 32], strides = [1, 1]} : vector<8x64xf32> to vector<8x32xf32>
    %222 = vector.extract_strided_slice %220 {offsets = [0, 32], sizes = [8, 32], strides = [1, 1]} : vector<8x64xf32> to vector<8x32xf32>
    %223 = vector.extract_strided_slice %210 {offsets = [0, 64], sizes = [8, 32], strides = [1, 1]} : vector<8x96xf32> to vector<8x32xf32>
    %224 = vector.extract_strided_slice %212 {offsets = [0, 64], sizes = [8, 32], strides = [1, 1]} : vector<8x96xf32> to vector<8x32xf32>
    %225 = arith.mulf %221, %224 : vector<8x32xf32>
    %226 = arith.addf %223, %225 : vector<8x32xf32>
    %227 = math.tanh %226 : vector<8x32xf32>
    %cst_31 = arith.constant 1.000000e+00 : f32
    %228 = vector.broadcast %cst_31 : f32 to vector<8x32xf32>
    %229 = arith.subf %228, %222 : vector<8x32xf32>
    %230 = arith.mulf %229, %227 : vector<8x32xf32>
    %231 = arith.mulf %222, %209 : vector<8x32xf32>
    %232 = arith.addf %230, %231 : vector<8x32xf32>
    %c7_i32 = arith.constant 7 : i32
    %233 = vector.broadcast %c7_i32 : i32 to vector<8x1xi32>
    %234 = arith.cmpi sgt, %1, %233 : vector<8x1xi32>
    %235 = vector.shape_cast %234 : vector<8x1xi1> to vector<8x1xi1>
    %236 = vector.broadcast %235 : vector<8x1xi1> to vector<8x32xi1>
    %237 = arith.select %236, %232, %209 : vector<8x32xi1>, vector<8x32xf32>
    %238 = vector.extract_strided_slice %6 {offsets = [0, 0], sizes = [8, 64], strides = [1, 1]} : vector<64x64xf32> to vector<8x64xf32>
    %239 = vector.extract_strided_slice %6 {offsets = [8, 0], sizes = [8, 64], strides = [1, 1]} : vector<64x64xf32> to vector<8x64xf32>
    %240 = arith.addf %238, %239 : vector<8x64xf32>
    %241 = vector.extract_strided_slice %6 {offsets = [16, 0], sizes = [8, 64], strides = [1, 1]} : vector<64x64xf32> to vector<8x64xf32>
    %242 = arith.addf %240, %241 : vector<8x64xf32>
    %243 = vector.extract_strided_slice %6 {offsets = [24, 0], sizes = [8, 64], strides = [1, 1]} : vector<64x64xf32> to vector<8x64xf32>
    %244 = arith.addf %242, %243 : vector<8x64xf32>
    %245 = vector.extract_strided_slice %6 {offsets = [32, 0], sizes = [8, 64], strides = [1, 1]} : vector<64x64xf32> to vector<8x64xf32>
    %246 = arith.addf %244, %245 : vector<8x64xf32>
    %247 = vector.extract_strided_slice %6 {offsets = [40, 0], sizes = [8, 64], strides = [1, 1]} : vector<64x64xf32> to vector<8x64xf32>
    %248 = arith.addf %246, %247 : vector<8x64xf32>
    %249 = vector.extract_strided_slice %6 {offsets = [48, 0], sizes = [8, 64], strides = [1, 1]} : vector<64x64xf32> to vector<8x64xf32>
    %250 = arith.addf %248, %249 : vector<8x64xf32>
    %251 = vector.extract_strided_slice %6 {offsets = [56, 0], sizes = [8, 64], strides = [1, 1]} : vector<64x64xf32> to vector<8x64xf32>
    %252 = arith.addf %250, %251 : vector<8x64xf32>
    %c0_32 = arith.constant 0 : index
    %c0_33 = arith.constant 0 : index
    %253 = vector.load %arg3[%c0_32, %c0_33] : memref<240x64xf32, #tpu.memory_space<vmem>>, vector<64x64xf32>
    %cst_34 = arith.constant dense<0.000000e+00> : vector<8x64xf32>
    %254 = tpu.matmul %252, %253, %cst_34 {dimension_numbers = #tpu.dot_dimension_numbers<[1], [0], [0], [1], [0, 0, 1, 1], [], []>} : vector<8x64xf32>, vector<64x64xf32>, vector<8x64xf32> -> vector<8x64xf32>
    %c0_35 = arith.constant 0 : index
    %c0_36 = arith.constant 0 : index
    %255 = vector.load %arg1[%c0_35, %c0_36] : memref<8x1xf32, #tpu.memory_space<vmem>>, vector<8x1xf32>
    %256 = vector.broadcast %255 : vector<8x1xf32> to vector<8x64xf32>
    %257 = arith.mulf %254, %256 : vector<8x64xf32>
    %c64_37 = arith.constant 64 : index
    %c0_38 = arith.constant 0 : index
    %258 = vector.load %arg3[%c64_37, %c0_38] : memref<240x64xf32, #tpu.memory_space<vmem>>, vector<32x64xf32>
    %c96_39 = arith.constant 96 : index
    %c0_40 = arith.constant 0 : index
    %259 = vector.load %arg3[%c96_39, %c0_40] : memref<240x64xf32, #tpu.memory_space<vmem>>, vector<64x64xf32>
    %c160 = arith.constant 160 : index
    %c0_41 = arith.constant 0 : index
    %260 = vector.load %arg3[%c160, %c0_41] : memref<240x64xf32, #tpu.memory_space<vmem>>, vector<1x64xf32>
    %c168 = arith.constant 168 : index
    %c0_42 = arith.constant 0 : index
    %261 = vector.load %arg3[%c168, %c0_42] : memref<240x64xf32, #tpu.memory_space<vmem>>, vector<64x64xf32>
    %c232 = arith.constant 232 : index
    %c0_43 = arith.constant 0 : index
    %262 = vector.load %arg3[%c232, %c0_43] : memref<240x64xf32, #tpu.memory_space<vmem>>, vector<1x64xf32>
    %cst_44 = arith.constant dense<0.000000e+00> : vector<8x64xf32>
    %263 = tpu.matmul %237, %258, %cst_44 {dimension_numbers = #tpu.dot_dimension_numbers<[1], [0], [0], [1], [0, 0, 1, 1], [], []>} : vector<8x32xf32>, vector<32x64xf32>, vector<8x64xf32> -> vector<8x64xf32>
    %cst_45 = arith.constant dense<0.000000e+00> : vector<8x64xf32>
    %264 = tpu.matmul %257, %259, %cst_45 {dimension_numbers = #tpu.dot_dimension_numbers<[1], [0], [0], [1], [0, 0, 1, 1], [], []>} : vector<8x64xf32>, vector<64x64xf32>, vector<8x64xf32> -> vector<8x64xf32>
    %265 = arith.addf %263, %264 : vector<8x64xf32>
    %266 = vector.broadcast %260 : vector<1x64xf32> to vector<8x64xf32>
    %267 = arith.addf %265, %266 : vector<8x64xf32>
    %268 = math.tanh %267 : vector<8x64xf32>
    %cst_46 = arith.constant dense<0.000000e+00> : vector<8x64xf32>
    %269 = tpu.matmul %268, %261, %cst_46 {dimension_numbers = #tpu.dot_dimension_numbers<[1], [0], [0], [1], [0, 0, 1, 1], [], []>} : vector<8x64xf32>, vector<64x64xf32>, vector<8x64xf32> -> vector<8x64xf32>
    %270 = vector.broadcast %262 : vector<1x64xf32> to vector<8x64xf32>
    %271 = arith.addf %269, %270 : vector<8x64xf32>
    %c0_47 = arith.constant 0 : index
    %c0_48 = arith.constant 0 : index
    %272 = vector.load %arg4[%c0_47, %c0_48] : memref<8x64xf32, #tpu.memory_space<vmem>>, vector<8x64xf32>
    tpu.vector_store %arg4[%c0_47, %c0_48], %271 {strides = array<i32>} : memref<8x64xf32, #tpu.memory_space<vmem>>, vector<8x64xf32>,
    return
  }
}

</mosaic_0001>

<llo_original>
// kernel: kerl_forward.1
$region0: #{kerl_forward.1}
  #allocation0 [shape = 'u32[]', space=smem, size = 0x4, offset = 0x4, fixed_abs, tag = 'smem constant byte address 0x4 - core index']
  #allocation1 [shape = 'u32[144,128]{1,0:T(1,128)}', space=vmem, size = 0x12000, scoped, tag = 'internal scratch']
  %s0 = inlined_call_operand.vmem [shape: s32[72,1], index: 0, kind: input, shape index: {}]
  %s1 = inlined_call_operand.vmem [shape: f32[8,1], index: 1, kind: input, shape index: {}]
  %s2 = inlined_call_operand.vmem [shape: f32[104,96], index: 2, kind: input, shape index: {}]
  %s3 = inlined_call_operand.vmem [shape: f32[240,64], index: 3, kind: input, shape index: {}]
  %s4 = inlined_call_operand.vmem [shape: f32[8,64], index: 4, kind: output, shape index: {}]
  %s5 = sld [smem:[#allocation0]]
  $region26: #{kerl_forward.1} parent=0
    _
  %s7 = ssub.s32 1, %s5
  %s8 = scalar_select 0, %s7, %s5
  // Predicated region
  $region2: #{kerl_forward.1} parent=0 // pred_check
    _
  $region3: #{kerl_forward.1} parent=0 // pred_check_branch
    %10 = sbr.rel (0) target = $region5
  $region4: #{kerl_forward.1} parent=0 // pred_region
    _
  $region5: #{kerl_forward.1} parent=0 // pred_fallthru
    _
  // Predicated region
  $region6: #{kerl_forward.1} parent=0 // pred_check
    _
  $region7: #{kerl_forward.1} parent=0 // pred_check_branch
    %12 = sbr.rel (0) target = $region9
  $region8: #{kerl_forward.1} parent=0 // pred_region
    _
  $region9: #{kerl_forward.1} parent=0 // pred_fallthru
    _
  // Predicated region
  $region10: #{kerl_forward.1} parent=0 // pred_check
    _
  $region11: #{kerl_forward.1} parent=0 // pred_check_branch
    %14 = sbr.rel (0) target = $region13
  $region12: #{kerl_forward.1} parent=0 // pred_region
    _
  $region13: #{kerl_forward.1} parent=0 // pred_fallthru
    _
  // Predicated region
  $region14: #{kerl_forward.1} parent=0 // pred_check
    _
  $region15: #{kerl_forward.1} parent=0 // pred_check_branch
    %16 = sbr.rel (0) target = $region17
  $region16: #{kerl_forward.1} parent=0 // pred_region
    _
  $region17: #{kerl_forward.1} parent=0 // pred_fallthru
    _
  %v17 = vld [vmem:[%s0] sm:$0xff]
  %v18 = vld [vmem:[%s0 + $0x8] sm:$0xff]
  %v19 = vld [vmem:[%s0 + $0x10] sm:$0xff]
  %v20 = vld [vmem:[%s0 + $0x18] sm:$0xff]
  %v21 = vld [vmem:[%s0 + $0x20] sm:$0xff]
  %v22 = vld [vmem:[%s0 + $0x28] sm:$0xff]
  %v23 = vld [vmem:[%s0 + $0x30] sm:$0xff]
  %v24 = vld [vmem:[%s0 + $0x38] sm:$0xff]
  %v25 = vld [vmem:[%s0 + $0x40] sm:$0xff]
  %v26 = vlaneseq
  %v27 = vand.u32 %v26, 127
  %28 = vset.pattern.permute.xlu0 0
  %29 = vperm.xlu0 %28, %v17
  %v30 = vpop.permute.xlu0 %29
  %31 = vset.pattern.permute.xlu0 0
  %32 = vperm.xlu0 %31, %v18
  %v33 = vpop.permute.xlu0 %32
  %34 = vset.pattern.permute.xlu0 0
  %35 = vperm.xlu0 %34, %v19
  %v36 = vpop.permute.xlu0 %35
  %37 = vset.pattern.permute.xlu0 0
  %38 = vperm.xlu0 %37, %v20
  %v39 = vpop.permute.xlu0 %38
  %40 = vset.pattern.permute.xlu0 0
  %41 = vperm.xlu0 %40, %v21
  %v42 = vpop.permute.xlu0 %41
  %43 = vset.pattern.permute.xlu0 0
  %44 = vperm.xlu0 %43, %v22
  %v45 = vpop.permute.xlu0 %44
  %46 = vset.pattern.permute.xlu0 0
  %47 = vperm.xlu0 %46, %v23
  %v48 = vpop.permute.xlu0 %47
  %49 = vset.pattern.permute.xlu0 0
  %50 = vperm.xlu0 %49, %v24
  %v51 = vpop.permute.xlu0 %50
  %vm52 = vcmp.eq.s32.totalorder %v30, %v27
  %vm53 = vcmp.eq.s32.totalorder %v33, %v27
  %vm54 = vcmp.eq.s32.totalorder %v36, %v27
  %vm55 = vcmp.eq.s32.totalorder %v39, %v27
  %vm56 = vcmp.eq.s32.totalorder %v42, %v27
  %vm57 = vcmp.eq.s32.totalorder %v45, %v27
  %vm58 = vcmp.eq.s32.totalorder %v48, %v27
  %vm59 = vcmp.eq.s32.totalorder %v51, %v27
  %v60 = vsel %vm52, 1, 0
  %v61 = vsel %vm53, 1, 0
  %v62 = vsel %vm54, 1, 0
  %v63 = vsel %vm55, 1, 0
  %v64 = vsel %vm56, 1, 0
  %v65 = vsel %vm57, 1, 0
  %v66 = vsel %vm58, 1, 0
  %v67 = vsel %vm59, 1, 0
  %v68 = vcvt.s32.f32 %v60
  %v69 = vcvt.s32.f32 %v61
  %v70 = vcvt.s32.f32 %v62
  %v71 = vcvt.s32.f32 %v63
  %v72 = vcvt.s32.f32 %v64
  %v73 = vcvt.s32.f32 %v65
  %v74 = vcvt.s32.f32 %v66
  %v75 = vcvt.s32.f32 %v67
  %v76 = vld [vmem:[%s2] sm:$0xff]
  %v77 = vld [vmem:[%s2 + $0x8] sm:$0xff]
  %v78 = vld [vmem:[%s2 + $0x10] sm:$0xff]
  %v79 = vld [vmem:[%s2 + $0x18] sm:$0xff]
  %v80 = vld [vmem:[%s2 + $0x20] sm:$0xff]
  %v81 = vld [vmem:[%s2 + $0x28] sm:$0xff]
  %v82 = vld [vmem:[%s2 + $0x30] sm:$0xff]
  %v83 = vld [vmem:[%s2 + $0x38] sm:$0xff]
  %v84 = vld [vmem:[%s2 + $0x40] sm:$0xff]
  %v85 = vld [vmem:[%s2 + $0x48] sm:$0xff]
  %v86 = vld [vmem:[%s2 + $0x50] sm:$0xff]
  %v87 = vld [vmem:[%s2 + $0x58] sm:$0xff]
  %v88 = vld [vmem:[%s2 + $0x60] sm:$0x1]
  %v89 = vlaneseq
  %v90 = vshrl.u32 %v89, 7
  %v91 = vsub.s32 0, %v90
  %v92 = vrot.slane %v88, %v91
  %vm93 = vcmask 523264
  %v95 = vsel %vm93, %v68, 0
  %v98 = vsel %vm93, %v69, 0
  %v101 = vsel %vm93, %v70, 0
  %v104 = vsel %vm93, %v71, 0
  %v107 = vsel %vm93, %v72, 0
  %v110 = vsel %vm93, %v73, 0
  %v113 = vsel %vm93, %v74, 0
  %v116 = vsel %vm93, %v75, 0
  %118 = vmatprep.subr.mxu0 0.0
  %119 = vmatpush1.msra.mxu0 0.0
  %120 = vmatprep.subr.mxu0 0.0
  %121 = vmatpush1.msra.mxu0 0.0
  %122 = vmatprep.subr.mxu0 0.0
  %123 = vmatpush1.msra.mxu0 0.0
  %124 = vmatprep.subr.mxu0 0.0
  %125 = vmatpush1.msra.mxu0 0.0
  %126 = vmatprep.subr.mxu0 0.0
  %127 = vmatpush1.msra.mxu0 0.0
  %128 = vmatprep.subr.mxu0 0.0
  %129 = vmatpush1.msra.mxu0 0.0
  %130 = vmatprep.subr.mxu0 0.0
  %131 = vmatpush1.msra.mxu0 0.0
  %132 = vmatprep.subr.mxu0 0.0
  %133 = vmatpush1.msra.mxu0 0.0
  %134 = vmatprep.subr.mxu0 0.0
  %135 = vmatpush1.msra.mxu0 %v83
  %136 = vmatprep.subr.mxu0 0.0
  %137 = vmatpush1.msra.mxu0 %v82
  %138 = vmatprep.subr.mxu0 0.0
  %139 = vmatpush1.msra.mxu0 %v81
  %140 = vmatprep.subr.mxu0 0.0
  %141 = vmatpush1.msra.mxu0 %v80
  %142 = vmatprep.subr.mxu0 0.0
  %143 = vmatpush1.msra.mxu0 %v79
  %144 = vmatprep.subr.mxu0 0.0
  %145 = vmatpush1.msra.mxu0 %v78
  %146 = vmatprep.subr.mxu0 0.0
  %147 = vmatpush1.msra.mxu0 %v77
  %148 = vmatprep.subr.mxu0 0.0
  %149 = vmatpush1.msra.mxu0 %v76
  %150 = vmatprep.subr.mxu0 0.0
  %151 = vmatpush2.msra.mxu0 0.0
  %152 = vmatprep.subr.mxu0 0.0
  %153 = vmatpush2.msra.mxu0 0.0
  %154 = vmatprep.subr.mxu0 0.0
  %155 = vmatpush2.msra.mxu0 0.0
  %156 = vmatprep.subr.mxu0 0.0
  %157 = vmatpush2.msra.mxu0 0.0
  %158 = vmatprep.subr.mxu0 0.0
  %159 = vmatpush2.msra.mxu0 0.0
  %160 = vmatprep.subr.mxu0 0.0
  %161 = vmatpush2.msra.mxu0 0.0
  %162 = vmatprep.subr.mxu0 0.0
  %163 = vmatpush2.msra.mxu0 0.0
  %164 = vmatprep.subr.mxu0 0.0
  %165 = vmatpush2.msra.mxu0 0.0
  %166 = vmatprep.subr.mxu0 0.0
  %167 = vmatpush2.msra.mxu0 0.0
  %168 = vmatprep.subr.mxu0 0.0
  %169 = vmatpush2.msra.mxu0 0.0
  %170 = vmatprep.subr.mxu0 0.0
  %171 = vmatpush2.msra.mxu0 0.0
  %172 = vmatprep.subr.mxu0 0.0
  %173 = vmatpush2.msra.mxu0 0.0
  %174 = vmatprep.subr.mxu0 0.0
  %175 = vmatpush2.msra.mxu0 0.0
  %176 = vmatprep.subr.mxu0 0.0
  %177 = vmatpush2.msra.mxu0 0.0
  %178 = vmatprep.subr.mxu0 0.0
  %179 = vmatpush2.msra.mxu0 0.0
  %180 = vmatprep.subr.mxu0 0.0
  %181 = vmatpush2.msra.mxu0 0.0
  %182 = vmatprep.mubr.f32.mxu0 0.0
  %183 = vmatmul.mubr.f32.gmra.mxu0 %v95
  %v184 = vpop.f32.mrf.mxu0
  %v185 = vadd.f32 0.0, %v184
  %v186 = vpop.f32.mrf.mxu0
  %187 = vmatprep.mubr.f32.mxu0 0.0
  %188 = vmatmul.mubr.f32.gmra.mxu0 %v98
  %v189 = vpop.f32.mrf.mxu0
  %v190 = vadd.f32 0.0, %v189
  %v191 = vpop.f32.mrf.mxu0
  %192 = vmatprep.mubr.f32.mxu0 0.0
  %193 = vmatmul.mubr.f32.gmra.mxu0 %v101
  %v194 = vpop.f32.mrf.mxu0
  %v195 = vadd.f32 0.0, %v194
  %v196 = vpop.f32.mrf.mxu0
  %197 = vmatprep.mubr.f32.mxu0 0.0
  %198 = vmatmul.mubr.f32.gmra.mxu0 %v104
  %v199 = vpop.f32.mrf.mxu0
  %v200 = vadd.f32 0.0, %v199
  %v201 = vpop.f32.mrf.mxu0
  %202 = vmatprep.mubr.f32.mxu0 0.0
  %203 = vmatmul.mubr.f32.gmra.mxu0 %v107
  %v204 = vpop.f32.mrf.mxu0
  %v205 = vadd.f32 0.0, %v204
  %v206 = vpop.f32.mrf.mxu0
  %207 = vmatprep.mubr.f32.mxu0 0.0
  %208 = vmatmul.mubr.f32.gmra.mxu0 %v110
  %v209 = vpop.f32.mrf.mxu0
  %v210 = vadd.f32 0.0, %v209
  %v211 = vpop.f32.mrf.mxu0
  %212 = vmatprep.mubr.f32.mxu0 0.0
  %213 = vmatmul.mubr.f32.gmra.mxu0 %v113
  %v214 = vpop.f32.mrf.mxu0
  %v215 = vadd.f32 0.0, %v214
  %v216 = vpop.f32.mrf.mxu0
  %217 = vmatprep.mubr.f32.mxu0 0.0
  %218 = vmatmul.mubr.f32.gmra.mxu0 %v116
  %v219 = vpop.f32.mrf.mxu0
  %v220 = vadd.f32 0.0, %v219
  %v221 = vpop.f32.mrf.mxu0
  %222 = vdwg.mxu0
  %vm223 = vcmask 261120
  %v225 = vsel %vm223, 0.0, 0
  %227 = vmatprep.subr.mxu0 0.0
  %228 = vmatpush1.msra.mxu0 0.0
  %229 = vmatprep.subr.mxu0 0.0
  %230 = vmatpush1.msra.mxu0 0.0
  %231 = vmatprep.subr.mxu0 0.0
  %232 = vmatpush1.msra.mxu0 0.0
  %233 = vmatprep.subr.mxu0 0.0
  %234 = vmatpush1.msra.mxu0 0.0
  %235 = vmatprep.subr.mxu0 0.0
  %236 = vmatpush1.msra.mxu0 0.0
  %237 = vmatprep.subr.mxu0 0.0
  %238 = vmatpush1.msra.mxu0 0.0
  %239 = vmatprep.subr.mxu0 0.0
  %240 = vmatpush1.msra.mxu0 0.0
  %241 = vmatprep.subr.mxu0 0.0
  %242 = vmatpush1.msra.mxu0 0.0
  %243 = vmatprep.subr.mxu0 0.0
  %244 = vmatpush1.msra.mxu0 0.0
  %245 = vmatprep.subr.mxu0 0.0
  %246 = vmatpush1.msra.mxu0 0.0
  %247 = vmatprep.subr.mxu0 0.0
  %248 = vmatpush1.msra.mxu0 0.0
  %249 = vmatprep.subr.mxu0 0.0
  %250 = vmatpush1.msra.mxu0 0.0
  %251 = vmatprep.subr.mxu0 0.0
  %252 = vmatpush1.msra.mxu0 %v87
  %253 = vmatprep.subr.mxu0 0.0
  %254 = vmatpush1.msra.mxu0 %v86
  %255 = vmatprep.subr.mxu0 0.0
  %256 = vmatpush1.msra.mxu0 %v85
  %257 = vmatprep.subr.mxu0 0.0
  %258 = vmatpush1.msra.mxu0 %v84
  %259 = vmatprep.subr.mxu0 0.0
  %260 = vmatpush2.msra.mxu0 0.0
  %261 = vmatprep.subr.mxu0 0.0
  %262 = vmatpush2.msra.mxu0 0.0
  %263 = vmatprep.subr.mxu0 0.0
  %264 = vmatpush2.msra.mxu0 0.0
  %265 = vmatprep.subr.mxu0 0.0
  %266 = vmatpush2.msra.mxu0 0.0
  %267 = vmatprep.subr.mxu0 0.0
  %268 = vmatpush2.msra.mxu0 0.0
  %269 = vmatprep.subr.mxu0 0.0
  %270 = vmatpush2.msra.mxu0 0.0
  %271 = vmatprep.subr.mxu0 0.0
  %272 = vmatpush2.msra.mxu0 0.0
  %273 = vmatprep.subr.mxu0 0.0
  %274 = vmatpush2.msra.mxu0 0.0
  %275 = vmatprep.subr.mxu0 0.0
  %276 = vmatpush2.msra.mxu0 0.0
  %277 = vmatprep.subr.mxu0 0.0
  %278 = vmatpush2.msra.mxu0 0.0
  %279 = vmatprep.subr.mxu0 0.0
  %280 = vmatpush2.msra.mxu0 0.0
  %281 = vmatprep.subr.mxu0 0.0
  %282 = vmatpush2.msra.mxu0 0.0
  %283 = vmatprep.subr.mxu0 0.0
  %284 = vmatpush2.msra.mxu0 0.0
  %285 = vmatprep.subr.mxu0 0.0
  %286 = vmatpush2.msra.mxu0 0.0
  %287 = vmatprep.subr.mxu0 0.0
  %288 = vmatpush2.msra.mxu0 0.0
  %289 = vmatprep.subr.mxu0 0.0
  %290 = vmatpush2.msra.mxu0 0.0
  %291 = vmatprep.mubr.f32.mxu0 0.0
  %292 = vmatmul.mubr.f32.gmra.mxu0 %v225
  %v293 = vpop.f32.mrf.mxu0
  %v294 = vadd.f32 %v92, %v293
  %v295 = vpop.f32.mrf.mxu0
  %296 = vdwg.mxu0
  %v297 = vadd.f32 %v185, %v294
  %v298 = vxor.u32 %v297, 2147483648
  %v299 = vmul.f32 %v298, 1.442695
  %v300 = vpow.pop %v299
  %v301 = vadd.f32 %v300, 1.0
  %v302 = vrcp.pop %v301
  %v303 = vmul.f32 1.0, %v302
  %305 = vrot.lane.b32.xlu0 %v294, 64
  %v306 = vpop.permute.xlu0 %305
  %v308 = vmul.f32 %v303, %v306
  %310 = vrot.lane.b32.xlu0 %v308, 64
  %v311 = vpop.permute.xlu0 %310
  %v313 = vadd.f32 %v185, %v311
  %v314 = vtanh.pop %v313
  %v315 = vsub.f32 1.0, %v303
  %317 = vrot.lane.b32.xlu0 %v314, 96
  %v318 = vpop.permute.xlu0 %317
  %v320 = vmul.f32 %v315, %v318
  %v321 = vmul.f32 %v303, 0.0
  %v322 = vadd.f32 %v320, %v321
  %vm323 = vcmp.gt.s32.totalorder %v25, 0
  %v324 = vsel %vm323, 1, 0
  %325 = vset.pattern.permute.xlu0 0
  %326 = vperm.xlu0 %325, %v324
  %v327 = vpop.permute.xlu0 %326
  %vm328 = vcmp.eq.s32.totalorder %v327, 1
  %v329 = vsel %vm328, %v322, 0.0
  %331 = vrot.lane.b32.xlu0 %v329, 96
  %v332 = vpop.permute.xlu0 %331
  %v333 = vsel %vm223, %v332, 0
  %335 = vmatprep.subr.mxu0 0.0
  %336 = vmatpush1.msra.mxu0 0.0
  %337 = vmatprep.subr.mxu0 0.0
  %338 = vmatpush1.msra.mxu0 0.0
  %339 = vmatprep.subr.mxu0 0.0
  %340 = vmatpush1.msra.mxu0 0.0
  %341 = vmatprep.subr.mxu0 0.0
  %342 = vmatpush1.msra.mxu0 0.0
  %343 = vmatprep.subr.mxu0 0.0
  %344 = vmatpush1.msra.mxu0 0.0
  %345 = vmatprep.subr.mxu0 0.0
  %346 = vmatpush1.msra.mxu0 0.0
  %347 = vmatprep.subr.mxu0 0.0
  %348 = vmatpush1.msra.mxu0 0.0
  %349 = vmatprep.subr.mxu0 0.0
  %350 = vmatpush1.msra.mxu0 0.0
  %351 = vmatprep.subr.mxu0 0.0
  %352 = vmatpush1.msra.mxu0 0.0
  %353 = vmatprep.subr.mxu0 0.0
  %354 = vmatpush1.msra.mxu0 0.0
  %355 = vmatprep.subr.mxu0 0.0
  %356 = vmatpush1.msra.mxu0 0.0
  %357 = vmatprep.subr.mxu0 0.0
  %358 = vmatpush1.msra.mxu0 0.0
  %359 = vmatprep.subr.mxu0 0.0
  %360 = vmatpush1.msra.mxu0 %v87
  %361 = vmatprep.subr.mxu0 0.0
  %362 = vmatpush1.msra.mxu0 %v86
  %363 = vmatprep.subr.mxu0 0.0
  %364 = vmatpush1.msra.mxu0 %v85
  %365 = vmatprep.subr.mxu0 0.0
  %366 = vmatpush1.msra.mxu0 %v84
  %367 = vmatprep.subr.mxu0 0.0
  %368 = vmatpush2.msra.mxu0 0.0
  %369 = vmatprep.subr.mxu0 0.0
  %370 = vmatpush2.msra.mxu0 0.0
  %371 = vmatprep.subr.mxu0 0.0
  %372 = vmatpush2.msra.mxu0 0.0
  %373 = vmatprep.subr.mxu0 0.0
  %374 = vmatpush2.msra.mxu0 0.0
  %375 = vmatprep.subr.mxu0 0.0
  %376 = vmatpush2.msra.mxu0 0.0
  %377 = vmatprep.subr.mxu0 0.0
  %378 = vmatpush2.msra.mxu0 0.0
  %379 = vmatprep.subr.mxu0 0.0
  %380 = vmatpush2.msra.mxu0 0.0
  %381 = vmatprep.subr.mxu0 0.0
  %382 = vmatpush2.msra.mxu0 0.0
  %383 = vmatprep.subr.mxu0 0.0
  %384 = vmatpush2.msra.mxu0 0.0
  %385 = vmatprep.subr.mxu0 0.0
  %386 = vmatpush2.msra.mxu0 0.0
  %387 = vmatprep.subr.mxu0 0.0
  %388 = vmatpush2.msra.mxu0 0.0
  %389 = vmatprep.subr.mxu0 0.0
  %390 = vmatpush2.msra.mxu0 0.0
  %391 = vmatprep.subr.mxu0 0.0
  %392 = vmatpush2.msra.mxu0 0.0
  %393 = vmatprep.subr.mxu0 0.0
  %394 = vmatpush2.msra.mxu0 0.0
  %395 = vmatprep.subr.mxu0 0.0
  %396 = vmatpush2.msra.mxu0 0.0
  %397 = vmatprep.subr.mxu0 0.0
  %398 = vmatpush2.msra.mxu0 0.0
  %399 = vmatprep.mubr.f32.mxu0 0.0
  %400 = vmatmul.mubr.f32.gmra.mxu0 %v333
  %v401 = vpop.f32.mrf.mxu0
  %v402 = vadd.f32 %v92, %v401
  %v403 = vpop.f32.mrf.mxu0
  %404 = vdwg.mxu0
  %v405 = vadd.f32 %v190, %v402
  %v406 = vxor.u32 %v405, 2147483648
  %v407 = vmul.f32 %v406, 1.442695
  %v408 = vpow.pop %v407
  %v409 = vadd.f32 %v408, 1.0
  %v410 = vrcp.pop %v409
  %v411 = vmul.f32 1.0, %v410
  %413 = vrot.lane.b32.xlu0 %v402, 64
  %v414 = vpop.permute.xlu0 %413
  %v416 = vmul.f32 %v411, %v414
  %418 = vrot.lane.b32.xlu0 %v416, 64
  %v419 = vpop.permute.xlu0 %418
  %v421 = vadd.f32 %v190, %v419
  %v422 = vtanh.pop %v421
  %v423 = vsub.f32 1.0, %v411
  %425 = vrot.lane.b32.xlu0 %v422, 96
  %v426 = vpop.permute.xlu0 %425
  %v428 = vmul.f32 %v423, %v426
  %v429 = vmul.f32 %v411, %v329
  %v430 = vadd.f32 %v428, %v429
  %vm431 = vcmp.gt.s32.totalorder %v25, 1
  %v432 = vsel %vm431, 1, 0
  %433 = vset.pattern.permute.xlu0 0
  %434 = vperm.xlu0 %433, %v432
  %v435 = vpop.permute.xlu0 %434
  %vm436 = vcmp.eq.s32.totalorder %v435, 1
  %v437 = vsel %vm436, %v430, %v329
  %439 = vrot.lane.b32.xlu0 %v437, 96
  %v440 = vpop.permute.xlu0 %439
  %v441 = vsel %vm223, %v440, 0
  %443 = vmatprep.subr.mxu0 0.0
  %444 = vmatpush1.msra.mxu0 0.0
  %445 = vmatprep.subr.mxu0 0.0
  %446 = vmatpush1.msra.mxu0 0.0
  %447 = vmatprep.subr.mxu0 0.0
  %448 = vmatpush1.msra.mxu0 0.0
  %449 = vmatprep.subr.mxu0 0.0
  %450 = vmatpush1.msra.mxu0 0.0
  %451 = vmatprep.subr.mxu0 0.0
  %452 = vmatpush1.msra.mxu0 0.0
  %453 = vmatprep.subr.mxu0 0.0
  %454 = vmatpush1.msra.mxu0 0.0
  %455 = vmatprep.subr.mxu0 0.0
  %456 = vmatpush1.msra.mxu0 0.0
  %457 = vmatprep.subr.mxu0 0.0
  %458 = vmatpush1.msra.mxu0 0.0
  %459 = vmatprep.subr.mxu0 0.0
  %460 = vmatpush1.msra.mxu0 0.0
  %461 = vmatprep.subr.mxu0 0.0
  %462 = vmatpush1.msra.mxu0 0.0
  %463 = vmatprep.subr.mxu0 0.0
  %464 = vmatpush1.msra.mxu0 0.0
  %465 = vmatprep.subr.mxu0 0.0
  %466 = vmatpush1.msra.mxu0 0.0
  %467 = vmatprep.subr.mxu0 0.0
  %468 = vmatpush1.msra.mxu0 %v87
  %469 = vmatprep.subr.mxu0 0.0
  %470 = vmatpush1.msra.mxu0 %v86
  %471 = vmatprep.subr.mxu0 0.0
  %472 = vmatpush1.msra.mxu0 %v85
  %473 = vmatprep.subr.mxu0 0.0
  %474 = vmatpush1.msra.mxu0 %v84
  %475 = vmatprep.subr.mxu0 0.0
  %476 = vmatpush2.msra.mxu0 0.0
  %477 = vmatprep.subr.mxu0 0.0
  %478 = vmatpush2.msra.mxu0 0.0
  %479 = vmatprep.subr.mxu0 0.0
  %480 = vmatpush2.msra.mxu0 0.0
  %481 = vmatprep.subr.mxu0 0.0
  %482 = vmatpush2.msra.mxu0 0.0
  %483 = vmatprep.subr.mxu0 0.0
  %484 = vmatpush2.msra.mxu0 0.0
  %485 = vmatprep.subr.mxu0 0.0
  %486 = vmatpush2.msra.mxu0 0.0
  %487 = vmatprep.subr.mxu0 0.0
  %488 = vmatpush2.msra.mxu0 0.0
  %489 = vmatprep.subr.mxu0 0.0
  %490 = vmatpush2.msra.mxu0 0.0
  %491 = vmatprep.subr.mxu0 0.0
  %492 = vmatpush2.msra.mxu0 0.0
  %493 = vmatprep.subr.mxu0 0.0
  %494 = vmatpush2.msra.mxu0 0.0
  %495 = vmatprep.subr.mxu0 0.0
  %496 = vmatpush2.msra.mxu0 0.0
  %497 = vmatprep.subr.mxu0 0.0
  %498 = vmatpush2.msra.mxu0 0.0
  %499 = vmatprep.subr.mxu0 0.0
  %500 = vmatpush2.msra.mxu0 0.0
  %501 = vmatprep.subr.mxu0 0.0
  %502 = vmatpush2.msra.mxu0 0.0
  %503 = vmatprep.subr.mxu0 0.0
  %504 = vmatpush2.msra.mxu0 0.0
  %505 = vmatprep.subr.mxu0 0.0
  %506 = vmatpush2.msra.mxu0 0.0
  %507 = vmatprep.mubr.f32.mxu0 0.0
  %508 = vmatmul.mubr.f32.gmra.mxu0 %v441
  %v509 = vpop.f32.mrf.mxu0
  %v510 = vadd.f32 %v92, %v509
  %v511 = vpop.f32.mrf.mxu0
  %512 = vdwg.mxu0
  %v513 = vadd.f32 %v195, %v510
  %v514 = vxor.u32 %v513, 2147483648
  %v515 = vmul.f32 %v514, 1.442695
  %v516 = vpow.pop %v515
  %v517 = vadd.f32 %v516, 1.0
  %v518 = vrcp.pop %v517
  %v519 = vmul.f32 1.0, %v518
  %521 = vrot.lane.b32.xlu0 %v510, 64
  %v522 = vpop.permute.xlu0 %521
  %v524 = vmul.f32 %v519, %v522
  %526 = vrot.lane.b32.xlu0 %v524, 64
  %v527 = vpop.permute.xlu0 %526
  %v529 = vadd.f32 %v195, %v527
  %v530 = vtanh.pop %v529
  %v531 = vsub.f32 1.0, %v519
  %533 = vrot.lane.b32.xlu0 %v530, 96
  %v534 = vpop.permute.xlu0 %533
  %v536 = vmul.f32 %v531, %v534
  %v537 = vmul.f32 %v519, %v437
  %v538 = vadd.f32 %v536, %v537
  %vm539 = vcmp.gt.s32.totalorder %v25, 2
  %v540 = vsel %vm539, 1, 0
  %541 = vset.pattern.permute.xlu0 0
  %542 = vperm.xlu0 %541, %v540
  %v543 = vpop.permute.xlu0 %542
  %vm544 = vcmp.eq.s32.totalorder %v543, 1
  %v545 = vsel %vm544, %v538, %v437
  %547 = vrot.lane.b32.xlu0 %v545, 96
  %v548 = vpop.permute.xlu0 %547
  %v549 = vsel %vm223, %v548, 0
  %551 = vmatprep.subr.mxu0 0.0
  %552 = vmatpush1.msra.mxu0 0.0
  %553 = vmatprep.subr.mxu0 0.0
  %554 = vmatpush1.msra.mxu0 0.0
  %555 = vmatprep.subr.mxu0 0.0
  %556 = vmatpush1.msra.mxu0 0.0
  %557 = vmatprep.subr.mxu0 0.0
  %558 = vmatpush1.msra.mxu0 0.0
  %559 = vmatprep.subr.mxu0 0.0
  %560 = vmatpush1.msra.mxu0 0.0
  %561 = vmatprep.subr.mxu0 0.0
  %562 = vmatpush1.msra.mxu0 0.0
  %563 = vmatprep.subr.mxu0 0.0
  %564 = vmatpush1.msra.mxu0 0.0
  %565 = vmatprep.subr.mxu0 0.0
  %566 = vmatpush1.msra.mxu0 0.0
  %567 = vmatprep.subr.mxu0 0.0
  %568 = vmatpush1.msra.mxu0 0.0
  %569 = vmatprep.subr.mxu0 0.0
  %570 = vmatpush1.msra.mxu0 0.0
  %571 = vmatprep.subr.mxu0 0.0
  %572 = vmatpush1.msra.mxu0 0.0
  %573 = vmatprep.subr.mxu0 0.0
  %574 = vmatpush1.msra.mxu0 0.0
  %575 = vmatprep.subr.mxu0 0.0
  %576 = vmatpush1.msra.mxu0 %v87
  %577 = vmatprep.subr.mxu0 0.0
  %578 = vmatpush1.msra.mxu0 %v86
  %579 = vmatprep.subr.mxu0 0.0
  %580 = vmatpush1.msra.mxu0 %v85
  %581 = vmatprep.subr.mxu0 0.0
  %582 = vmatpush1.msra.mxu0 %v84
  %583 = vmatprep.subr.mxu0 0.0
  %584 = vmatpush2.msra.mxu0 0.0
  %585 = vmatprep.subr.mxu0 0.0
  %586 = vmatpush2.msra.mxu0 0.0
  %587 = vmatprep.subr.mxu0 0.0
  %588 = vmatpush2.msra.mxu0 0.0
  %589 = vmatprep.subr.mxu0 0.0
  %590 = vmatpush2.msra.mxu0 0.0
  %591 = vmatprep.subr.mxu0 0.0
  %592 = vmatpush2.msra.mxu0 0.0
  %593 = vmatprep.subr.mxu0 0.0
  %594 = vmatpush2.msra.mxu0 0.0
  %595 = vmatprep.subr.mxu0 0.0
  %596 = vmatpush2.msra.mxu0 0.0
  %597 = vmatprep.subr.mxu0 0.0
  %598 = vmatpush2.msra.mxu0 0.0
  %599 = vmatprep.subr.mxu0 0.0
  %600 = vmatpush2.msra.mxu0 0.0
  %601 = vmatprep.subr.mxu0 0.0
  %602 = vmatpush2.msra.mxu0 0.0
  %603 = vmatprep.subr.mxu0 0.0
  %604 = vmatpush2.msra.mxu0 0.0
  %605 = vmatprep.subr.mxu0 0.0
  %606 = vmatpush2.msra.mxu0 0.0
  %607 = vmatprep.subr.mxu0 0.0
  %608 = vmatpush2.msra.mxu0 0.0
  %609 = vmatprep.subr.mxu0 0.0
  %610 = vmatpush2.msra.mxu0 0.0
  %611 = vmatprep.subr.mxu0 0.0
  %612 = vmatpush2.msra.mxu0 0.0
  %613 = vmatprep.subr.mxu0 0.0
  %614 = vmatpush2.msra.mxu0 0.0
  %615 = vmatprep.mubr.f32.mxu0 0.0
  %616 = vmatmul.mubr.f32.gmra.mxu0 %v549
  %v617 = vpop.f32.mrf.mxu0
  %v618 = vadd.f32 %v92, %v617
  %v619 = vpop.f32.mrf.mxu0
  %620 = vdwg.mxu0
  %v621 = vadd.f32 %v200, %v618
  %v622 = vxor.u32 %v621, 2147483648
  %v623 = vmul.f32 %v622, 1.442695
  %v624 = vpow.pop %v623
  %v625 = vadd.f32 %v624, 1.0
  %v626 = vrcp.pop %v625
  %v627 = vmul.f32 1.0, %v626
  %629 = vrot.lane.b32.xlu0 %v618, 64
  %v630 = vpop.permute.xlu0 %629
  %v632 = vmul.f32 %v627, %v630
  %634 = vrot.lane.b32.xlu0 %v632, 64
  %v635 = vpop.permute.xlu0 %634
  %v637 = vadd.f32 %v200, %v635
  %v638 = vtanh.pop %v637
  %v639 = vsub.f32 1.0, %v627
  %641 = vrot.lane.b32.xlu0 %v638, 96
  %v642 = vpop.permute.xlu0 %641
  %v644 = vmul.f32 %v639, %v642
  %v645 = vmul.f32 %v627, %v545
  %v646 = vadd.f32 %v644, %v645
  %vm647 = vcmp.gt.s32.totalorder %v25, 3
  %v648 = vsel %vm647, 1, 0
  %649 = vset.pattern.permute.xlu0 0
  %650 = vperm.xlu0 %649, %v648
  %v651 = vpop.permute.xlu0 %650
  %vm652 = vcmp.eq.s32.totalorder %v651, 1
  %v653 = vsel %vm652, %v646, %v545
  %655 = vrot.lane.b32.xlu0 %v653, 96
  %v656 = vpop.permute.xlu0 %655
  %v657 = vsel %vm223, %v656, 0
  %659 = vmatprep.subr.mxu0 0.0
  %660 = vmatpush1.msra.mxu0 0.0
  %661 = vmatprep.subr.mxu0 0.0
  %662 = vmatpush1.msra.mxu0 0.0
  %663 = vmatprep.subr.mxu0 0.0
  %664 = vmatpush1.msra.mxu0 0.0
  %665 = vmatprep.subr.mxu0 0.0
  %666 = vmatpush1.msra.mxu0 0.0
  %667 = vmatprep.subr.mxu0 0.0
  %668 = vmatpush1.msra.mxu0 0.0
  %669 = vmatprep.subr.mxu0 0.0
  %670 = vmatpush1.msra.mxu0 0.0
  %671 = vmatprep.subr.mxu0 0.0
  %672 = vmatpush1.msra.mxu0 0.0
  %673 = vmatprep.subr.mxu0 0.0
  %674 = vmatpush1.msra.mxu0 0.0
  %675 = vmatprep.subr.mxu0 0.0
  %676 = vmatpush1.msra.mxu0 0.0
  %677 = vmatprep.subr.mxu0 0.0
  %678 = vmatpush1.msra.mxu0 0.0
  %679 = vmatprep.subr.mxu0 0.0
  %680 = vmatpush1.msra.mxu0 0.0
  %681 = vmatprep.subr.mxu0 0.0
  %682 = vmatpush1.msra.mxu0 0.0
  %683 = vmatprep.subr.mxu0 0.0
  %684 = vmatpush1.msra.mxu0 %v87
  %685 = vmatprep.subr.mxu0 0.0
  %686 = vmatpush1.msra.mxu0 %v86
  %687 = vmatprep.subr.mxu0 0.0
  %688 = vmatpush1.msra.mxu0 %v85
  %689 = vmatprep.subr.mxu0 0.0
  %690 = vmatpush1.msra.mxu0 %v84
  %691 = vmatprep.subr.mxu0 0.0
  %692 = vmatpush2.msra.mxu0 0.0
  %693 = vmatprep.subr.mxu0 0.0
  %694 = vmatpush2.msra.mxu0 0.0
  %695 = vmatprep.subr.mxu0 0.0
  %696 = vmatpush2.msra.mxu0 0.0
  %697 = vmatprep.subr.mxu0 0.0
  %698 = vmatpush2.msra.mxu0 0.0
  %699 = vmatprep.subr.mxu0 0.0
  %700 = vmatpush2.msra.mxu0 0.0
  %701 = vmatprep.subr.mxu0 0.0
  %702 = vmatpush2.msra.mxu0 0.0
  %703 = vmatprep.subr.mxu0 0.0
  %704 = vmatpush2.msra.mxu0 0.0
  %705 = vmatprep.subr.mxu0 0.0
  %706 = vmatpush2.msra.mxu0 0.0
  %707 = vmatprep.subr.mxu0 0.0
  %708 = vmatpush2.msra.mxu0 0.0
  %709 = vmatprep.subr.mxu0 0.0
  %710 = vmatpush2.msra.mxu0 0.0
  %711 = vmatprep.subr.mxu0 0.0
  %712 = vmatpush2.msra.mxu0 0.0
  %713 = vmatprep.subr.mxu0 0.0
  %714 = vmatpush2.msra.mxu0 0.0
  %715 = vmatprep.subr.mxu0 0.0
  %716 = vmatpush2.msra.mxu0 0.0
  %717 = vmatprep.subr.mxu0 0.0
  %718 = vmatpush2.msra.mxu0 0.0
  %719 = vmatprep.subr.mxu0 0.0
  %720 = vmatpush2.msra.mxu0 0.0
  %721 = vmatprep.subr.mxu0 0.0
  %722 = vmatpush2.msra.mxu0 0.0
  %723 = vmatprep.mubr.f32.mxu0 0.0
  %724 = vmatmul.mubr.f32.gmra.mxu0 %v657
  %v725 = vpop.f32.mrf.mxu0
  %v726 = vadd.f32 %v92, %v725
  %v727 = vpop.f32.mrf.mxu0
  %728 = vdwg.mxu0
  %v729 = vadd.f32 %v205, %v726
  %v730 = vxor.u32 %v729, 2147483648
  %v731 = vmul.f32 %v730, 1.442695
  %v732 = vpow.pop %v731
  %v733 = vadd.f32 %v732, 1.0
  %v734 = vrcp.pop %v733
  %v735 = vmul.f32 1.0, %v734
  %737 = vrot.lane.b32.xlu0 %v726, 64
  %v738 = vpop.permute.xlu0 %737
  %v740 = vmul.f32 %v735, %v738
  %742 = vrot.lane.b32.xlu0 %v740, 64
  %v743 = vpop.permute.xlu0 %742
  %v745 = vadd.f32 %v205, %v743
  %v746 = vtanh.pop %v745
  %v747 = vsub.f32 1.0, %v735
  %749 = vrot.lane.b32.xlu0 %v746, 96
  %v750 = vpop.permute.xlu0 %749
  %v752 = vmul.f32 %v747, %v750
  %v753 = vmul.f32 %v735, %v653
  %v754 = vadd.f32 %v752, %v753
  %vm755 = vcmp.gt.s32.totalorder %v25, 4
  %v756 = vsel %vm755, 1, 0
  %757 = vset.pattern.permute.xlu0 0
  %758 = vperm.xlu0 %757, %v756
  %v759 = vpop.permute.xlu0 %758
  %vm760 = vcmp.eq.s32.totalorder %v759, 1
  %v761 = vsel %vm760, %v754, %v653
  %763 = vrot.lane.b32.xlu0 %v761, 96
  %v764 = vpop.permute.xlu0 %763
  %v765 = vsel %vm223, %v764, 0
  %767 = vmatprep.subr.mxu0 0.0
  %768 = vmatpush1.msra.mxu0 0.0
  %769 = vmatprep.subr.mxu0 0.0
  %770 = vmatpush1.msra.mxu0 0.0
  %771 = vmatprep.subr.mxu0 0.0
  %772 = vmatpush1.msra.mxu0 0.0
  %773 = vmatprep.subr.mxu0 0.0
  %774 = vmatpush1.msra.mxu0 0.0
  %775 = vmatprep.subr.mxu0 0.0
  %776 = vmatpush1.msra.mxu0 0.0
  %777 = vmatprep.subr.mxu0 0.0
  %778 = vmatpush1.msra.mxu0 0.0
  %779 = vmatprep.subr.mxu0 0.0
  %780 = vmatpush1.msra.mxu0 0.0
  %781 = vmatprep.subr.mxu0 0.0
  %782 = vmatpush1.msra.mxu0 0.0
  %783 = vmatprep.subr.mxu0 0.0
  %784 = vmatpush1.msra.mxu0 0.0
  %785 = vmatprep.subr.mxu0 0.0
  %786 = vmatpush1.msra.mxu0 0.0
  %787 = vmatprep.subr.mxu0 0.0
  %788 = vmatpush1.msra.mxu0 0.0
  %789 = vmatprep.subr.mxu0 0.0
  %790 = vmatpush1.msra.mxu0 0.0
  %791 = vmatprep.subr.mxu0 0.0
  %792 = vmatpush1.msra.mxu0 %v87
  %793 = vmatprep.subr.mxu0 0.0
  %794 = vmatpush1.msra.mxu0 %v86
  %795 = vmatprep.subr.mxu0 0.0
  %796 = vmatpush1.msra.mxu0 %v85
  %797 = vmatprep.subr.mxu0 0.0
  %798 = vmatpush1.msra.mxu0 %v84
  %799 = vmatprep.subr.mxu0 0.0
  %800 = vmatpush2.msra.mxu0 0.0
  %801 = vmatprep.subr.mxu0 0.0
  %802 = vmatpush2.msra.mxu0 0.0
  %803 = vmatprep.subr.mxu0 0.0
  %804 = vmatpush2.msra.mxu0 0.0
  %805 = vmatprep.subr.mxu0 0.0
  %806 = vmatpush2.msra.mxu0 0.0
  %807 = vmatprep.subr.mxu0 0.0
  %808 = vmatpush2.msra.mxu0 0.0
  %809 = vmatprep.subr.mxu0 0.0
  %810 = vmatpush2.msra.mxu0 0.0
  %811 = vmatprep.subr.mxu0 0.0
  %812 = vmatpush2.msra.mxu0 0.0
  %813 = vmatprep.subr.mxu0 0.0
  %814 = vmatpush2.msra.mxu0 0.0
  %815 = vmatprep.subr.mxu0 0.0
  %816 = vmatpush2.msra.mxu0 0.0
  %817 = vmatprep.subr.mxu0 0.0
  %818 = vmatpush2.msra.mxu0 0.0
  %819 = vmatprep.subr.mxu0 0.0
  %820 = vmatpush2.msra.mxu0 0.0
  %821 = vmatprep.subr.mxu0 0.0
  %822 = vmatpush2.msra.mxu0 0.0
  %823 = vmatprep.subr.mxu0 0.0
  %824 = vmatpush2.msra.mxu0 0.0
  %825 = vmatprep.subr.mxu0 0.0
  %826 = vmatpush2.msra.mxu0 0.0
  %827 = vmatprep.subr.mxu0 0.0
  %828 = vmatpush2.msra.mxu0 0.0
  %829 = vmatprep.subr.mxu0 0.0
  %830 = vmatpush2.msra.mxu0 0.0
  %831 = vmatprep.mubr.f32.mxu0 0.0
  %832 = vmatmul.mubr.f32.gmra.mxu0 %v765
  %v833 = vpop.f32.mrf.mxu0
  %v834 = vadd.f32 %v92, %v833
  %v835 = vpop.f32.mrf.mxu0
  %836 = vdwg.mxu0
  %v837 = vadd.f32 %v210, %v834
  %v838 = vxor.u32 %v837, 2147483648
  %v839 = vmul.f32 %v838, 1.442695
  %v840 = vpow.pop %v839
  %v841 = vadd.f32 %v840, 1.0
  %v842 = vrcp.pop %v841
  %v843 = vmul.f32 1.0, %v842
  %845 = vrot.lane.b32.xlu0 %v834, 64
  %v846 = vpop.permute.xlu0 %845
  %v848 = vmul.f32 %v843, %v846
  %850 = vrot.lane.b32.xlu0 %v848, 64
  %v851 = vpop.permute.xlu0 %850
  %v853 = vadd.f32 %v210, %v851
  %v854 = vtanh.pop %v853
  %v855 = vsub.f32 1.0, %v843
  %857 = vrot.lane.b32.xlu0 %v854, 96
  %v858 = vpop.permute.xlu0 %857
  %v860 = vmul.f32 %v855, %v858
  %v861 = vmul.f32 %v843, %v761
  %v862 = vadd.f32 %v860, %v861
  %vm863 = vcmp.gt.s32.totalorder %v25, 5
  %v864 = vsel %vm863, 1, 0
  %865 = vset.pattern.permute.xlu0 0
  %866 = vperm.xlu0 %865, %v864
  %v867 = vpop.permute.xlu0 %866
  %vm868 = vcmp.eq.s32.totalorder %v867, 1
  %v869 = vsel %vm868, %v862, %v761
  %871 = vrot.lane.b32.xlu0 %v869, 96
  %v872 = vpop.permute.xlu0 %871
  %v873 = vsel %vm223, %v872, 0
  %875 = vmatprep.subr.mxu0 0.0
  %876 = vmatpush1.msra.mxu0 0.0
  %877 = vmatprep.subr.mxu0 0.0
  %878 = vmatpush1.msra.mxu0 0.0
  %879 = vmatprep.subr.mxu0 0.0
  %880 = vmatpush1.msra.mxu0 0.0
  %881 = vmatprep.subr.mxu0 0.0
  %882 = vmatpush1.msra.mxu0 0.0
  %883 = vmatprep.subr.mxu0 0.0
  %884 = vmatpush1.msra.mxu0 0.0
  %885 = vmatprep.subr.mxu0 0.0
  %886 = vmatpush1.msra.mxu0 0.0
  %887 = vmatprep.subr.mxu0 0.0
  %888 = vmatpush1.msra.mxu0 0.0
  %889 = vmatprep.subr.mxu0 0.0
  %890 = vmatpush1.msra.mxu0 0.0
  %891 = vmatprep.subr.mxu0 0.0
  %892 = vmatpush1.msra.mxu0 0.0
  %893 = vmatprep.subr.mxu0 0.0
  %894 = vmatpush1.msra.mxu0 0.0
  %895 = vmatprep.subr.mxu0 0.0
  %896 = vmatpush1.msra.mxu0 0.0
  %897 = vmatprep.subr.mxu0 0.0
  %898 = vmatpush1.msra.mxu0 0.0
  %899 = vmatprep.subr.mxu0 0.0
  %900 = vmatpush1.msra.mxu0 %v87
  %901 = vmatprep.subr.mxu0 0.0
  %902 = vmatpush1.msra.mxu0 %v86
  %903 = vmatprep.subr.mxu0 0.0
  %904 = vmatpush1.msra.mxu0 %v85
  %905 = vmatprep.subr.mxu0 0.0
  %906 = vmatpush1.msra.mxu0 %v84
  %907 = vmatprep.subr.mxu0 0.0
  %908 = vmatpush2.msra.mxu0 0.0
  %909 = vmatprep.subr.mxu0 0.0
  %910 = vmatpush2.msra.mxu0 0.0
  %911 = vmatprep.subr.mxu0 0.0
  %912 = vmatpush2.msra.mxu0 0.0
  %913 = vmatprep.subr.mxu0 0.0
  %914 = vmatpush2.msra.mxu0 0.0
  %915 = vmatprep.subr.mxu0 0.0
  %916 = vmatpush2.msra.mxu0 0.0
  %917 = vmatprep.subr.mxu0 0.0
  %918 = vmatpush2.msra.mxu0 0.0
  %919 = vmatprep.subr.mxu0 0.0
  %920 = vmatpush2.msra.mxu0 0.0
  %921 = vmatprep.subr.mxu0 0.0
  %922 = vmatpush2.msra.mxu0 0.0
  %923 = vmatprep.subr.mxu0 0.0
  %924 = vmatpush2.msra.mxu0 0.0
  %925 = vmatprep.subr.mxu0 0.0
  %926 = vmatpush2.msra.mxu0 0.0
  %927 = vmatprep.subr.mxu0 0.0
  %928 = vmatpush2.msra.mxu0 0.0
  %929 = vmatprep.subr.mxu0 0.0
  %930 = vmatpush2.msra.mxu0 0.0
  %931 = vmatprep.subr.mxu0 0.0
  %932 = vmatpush2.msra.mxu0 0.0
  %933 = vmatprep.subr.mxu0 0.0
  %934 = vmatpush2.msra.mxu0 0.0
  %935 = vmatprep.subr.mxu0 0.0
  %936 = vmatpush2.msra.mxu0 0.0
  %937 = vmatprep.subr.mxu0 0.0
  %938 = vmatpush2.msra.mxu0 0.0
  %939 = vmatprep.mubr.f32.mxu0 0.0
  %940 = vmatmul.mubr.f32.gmra.mxu0 %v873
  %v941 = vpop.f32.mrf.mxu0
  %v942 = vadd.f32 %v92, %v941
  %v943 = vpop.f32.mrf.mxu0
  %944 = vdwg.mxu0
  %v945 = vadd.f32 %v215, %v942
  %v946 = vxor.u32 %v945, 2147483648
  %v947 = vmul.f32 %v946, 1.442695
  %v948 = vpow.pop %v947
  %v949 = vadd.f32 %v948, 1.0
  %v950 = vrcp.pop %v949
  %v951 = vmul.f32 1.0, %v950
  %953 = vrot.lane.b32.xlu0 %v942, 64
  %v954 = vpop.permute.xlu0 %953
  %v956 = vmul.f32 %v951, %v954
  %958 = vrot.lane.b32.xlu0 %v956, 64
  %v959 = vpop.permute.xlu0 %958
  %v961 = vadd.f32 %v215, %v959
  %v962 = vtanh.pop %v961
  %v963 = vsub.f32 1.0, %v951
  %965 = vrot.lane.b32.xlu0 %v962, 96
  %v966 = vpop.permute.xlu0 %965
  %v968 = vmul.f32 %v963, %v966
  %v969 = vmul.f32 %v951, %v869
  %v970 = vadd.f32 %v968, %v969
  %vm971 = vcmp.gt.s32.totalorder %v25, 6
  %v972 = vsel %vm971, 1, 0
  %973 = vset.pattern.permute.xlu0 0
  %974 = vperm.xlu0 %973, %v972
  %v975 = vpop.permute.xlu0 %974
  %vm976 = vcmp.eq.s32.totalorder %v975, 1
  %v977 = vsel %vm976, %v970, %v869
  %979 = vrot.lane.b32.xlu0 %v977, 96
  %v980 = vpop.permute.xlu0 %979
  %v981 = vsel %vm223, %v980, 0
  %983 = vmatprep.subr.mxu0 0.0
  %984 = vmatpush1.msra.mxu0 0.0
  %985 = vmatprep.subr.mxu0 0.0
  %986 = vmatpush1.msra.mxu0 0.0
  %987 = vmatprep.subr.mxu0 0.0
  %988 = vmatpush1.msra.mxu0 0.0
  %989 = vmatprep.subr.mxu0 0.0
  %990 = vmatpush1.msra.mxu0 0.0
  %991 = vmatprep.subr.mxu0 0.0
  %992 = vmatpush1.msra.mxu0 0.0
  %993 = vmatprep.subr.mxu0 0.0
  %994 = vmatpush1.msra.mxu0 0.0
  %995 = vmatprep.subr.mxu0 0.0
  %996 = vmatpush1.msra.mxu0 0.0
  %997 = vmatprep.subr.mxu0 0.0
  %998 = vmatpush1.msra.mxu0 0.0
  %999 = vmatprep.subr.mxu0 0.0
  %1000 = vmatpush1.msra.mxu0 0.0
  %1001 = vmatprep.subr.mxu0 0.0
  %1002 = vmatpush1.msra.mxu0 0.0
  %1003 = vmatprep.subr.mxu0 0.0
  %1004 = vmatpush1.msra.mxu0 0.0
  %1005 = vmatprep.subr.mxu0 0.0
  %1006 = vmatpush1.msra.mxu0 0.0
  %1007 = vmatprep.subr.mxu0 0.0
  %1008 = vmatpush1.msra.mxu0 %v87
  %1009 = vmatprep.subr.mxu0 0.0
  %1010 = vmatpush1.msra.mxu0 %v86
  %1011 = vmatprep.subr.mxu0 0.0
  %1012 = vmatpush1.msra.mxu0 %v85
  %1013 = vmatprep.subr.mxu0 0.0
  %1014 = vmatpush1.msra.mxu0 %v84
  %1015 = vmatprep.subr.mxu0 0.0
  %1016 = vmatpush2.msra.mxu0 0.0
  %1017 = vmatprep.subr.mxu0 0.0
  %1018 = vmatpush2.msra.mxu0 0.0
  %1019 = vmatprep.subr.mxu0 0.0
  %1020 = vmatpush2.msra.mxu0 0.0
  %1021 = vmatprep.subr.mxu0 0.0
  %1022 = vmatpush2.msra.mxu0 0.0
  %1023 = vmatprep.subr.mxu0 0.0
  %1024 = vmatpush2.msra.mxu0 0.0
  %1025 = vmatprep.subr.mxu0 0.0
  %1026 = vmatpush2.msra.mxu0 0.0
  %1027 = vmatprep.subr.mxu0 0.0
  %1028 = vmatpush2.msra.mxu0 0.0
  %1029 = vmatprep.subr.mxu0 0.0
  %1030 = vmatpush2.msra.mxu0 0.0
  %1031 = vmatprep.subr.mxu0 0.0
  %1032 = vmatpush2.msra.mxu0 0.0
  %1033 = vmatprep.subr.mxu0 0.0
  %1034 = vmatpush2.msra.mxu0 0.0
  %1035 = vmatprep.subr.mxu0 0.0
  %1036 = vmatpush2.msra.mxu0 0.0
  %1037 = vmatprep.subr.mxu0 0.0
  %1038 = vmatpush2.msra.mxu0 0.0
  %1039 = vmatprep.subr.mxu0 0.0
  %1040 = vmatpush2.msra.mxu0 0.0
  %1041 = vmatprep.subr.mxu0 0.0
  %1042 = vmatpush2.msra.mxu0 0.0
  %1043 = vmatprep.subr.mxu0 0.0
  %1044 = vmatpush2.msra.mxu0 0.0
  %1045 = vmatprep.subr.mxu0 0.0
  %1046 = vmatpush2.msra.mxu0 0.0
  %1047 = vmatprep.mubr.f32.mxu0 0.0
  %1048 = vmatmul.mubr.f32.gmra.mxu0 %v981
  %v1049 = vpop.f32.mrf.mxu0
  %v1050 = vadd.f32 %v92, %v1049
  %v1051 = vpop.f32.mrf.mxu0
  %1052 = vdwg.mxu0
  %v1053 = vadd.f32 %v220, %v1050
  %v1054 = vxor.u32 %v1053, 2147483648
  %v1055 = vmul.f32 %v1054, 1.442695
  %v1056 = vpow.pop %v1055
  %v1057 = vadd.f32 %v1056, 1.0
  %v1058 = vrcp.pop %v1057
  %v1059 = vmul.f32 1.0, %v1058
  %1061 = vrot.lane.b32.xlu0 %v1050, 64
  %v1062 = vpop.permute.xlu0 %1061
  %v1064 = vmul.f32 %v1059, %v1062
  %1066 = vrot.lane.b32.xlu0 %v1064, 64
  %v1067 = vpop.permute.xlu0 %1066
  %v1069 = vadd.f32 %v220, %v1067
  %v1070 = vtanh.pop %v1069
  %v1071 = vsub.f32 1.0, %v1059
  %1073 = vrot.lane.b32.xlu0 %v1070, 96
  %v1074 = vpop.permute.xlu0 %1073
  %v1076 = vmul.f32 %v1071, %v1074
  %v1077 = vmul.f32 %v1059, %v977
  %v1078 = vadd.f32 %v1076, %v1077
  %vm1079 = vcmp.gt.s32.totalorder %v25, 7
  %v1080 = vsel %vm1079, 1, 0
  %1081 = vset.pattern.permute.xlu0 0
  %1082 = vperm.xlu0 %1081, %v1080
  %v1083 = vpop.permute.xlu0 %1082
  %vm1084 = vcmp.eq.s32.totalorder %v1083, 1
  %v1085 = vsel %vm1084, %v1078, %v977
  %v1086 = vadd.f32 %v68, %v69
  %v1087 = vadd.f32 %v1086, %v70
  %v1088 = vadd.f32 %v1087, %v71
  %v1089 = vadd.f32 %v1088, %v72
  %v1090 = vadd.f32 %v1089, %v73
  %v1091 = vadd.f32 %v1090, %v74
  %v1092 = vadd.f32 %v1091, %v75
  %v1093 = vld [vmem:[%s3] sm:$0xff]
  %v1094 = vld [vmem:[%s3 + $0x8] sm:$0xff]
  %v1095 = vld [vmem:[%s3 + $0x10] sm:$0xff]
  %v1096 = vld [vmem:[%s3 + $0x18] sm:$0xff]
  %v1097 = vld [vmem:[%s3 + $0x20] sm:$0xff]
  %v1098 = vld [vmem:[%s3 + $0x28] sm:$0xff]
  %v1099 = vld [vmem:[%s3 + $0x30] sm:$0xff]
  %v1100 = vld [vmem:[%s3 + $0x38] sm:$0xff]
  %v1102 = vsel %vm93, %v1092, 0
  %1104 = vmatprep.subr.mxu0 0.0
  %1105 = vmatpush1.msra.mxu0 0.0
  %1106 = vmatprep.subr.mxu0 0.0
  %1107 = vmatpush1.msra.mxu0 0.0
  %1108 = vmatprep.subr.mxu0 0.0
  %1109 = vmatpush1.msra.mxu0 0.0
  %1110 = vmatprep.subr.mxu0 0.0
  %1111 = vmatpush1.msra.mxu0 0.0
  %1112 = vmatprep.subr.mxu0 0.0
  %1113 = vmatpush1.msra.mxu0 0.0
  %1114 = vmatprep.subr.mxu0 0.0
  %1115 = vmatpush1.msra.mxu0 0.0
  %1116 = vmatprep.subr.mxu0 0.0
  %1117 = vmatpush1.msra.mxu0 0.0
  %1118 = vmatprep.subr.mxu0 0.0
  %1119 = vmatpush1.msra.mxu0 0.0
  %1120 = vmatprep.subr.mxu0 0.0
  %1121 = vmatpush1.msra.mxu0 %v1100
  %1122 = vmatprep.subr.mxu0 0.0
  %1123 = vmatpush1.msra.mxu0 %v1099
  %1124 = vmatprep.subr.mxu0 0.0
  %1125 = vmatpush1.msra.mxu0 %v1098
  %1126 = vmatprep.subr.mxu0 0.0
  %1127 = vmatpush1.msra.mxu0 %v1097
  %1128 = vmatprep.subr.mxu0 0.0
  %1129 = vmatpush1.msra.mxu0 %v1096
  %1130 = vmatprep.subr.mxu0 0.0
  %1131 = vmatpush1.msra.mxu0 %v1095
  %1132 = vmatprep.subr.mxu0 0.0
  %1133 = vmatpush1.msra.mxu0 %v1094
  %1134 = vmatprep.subr.mxu0 0.0
  %1135 = vmatpush1.msra.mxu0 %v1093
  %1136 = vmatprep.subr.mxu0 0.0
  %1137 = vmatpush2.msra.mxu0 0.0
  %1138 = vmatprep.subr.mxu0 0.0
  %1139 = vmatpush2.msra.mxu0 0.0
  %1140 = vmatprep.subr.mxu0 0.0
  %1141 = vmatpush2.msra.mxu0 0.0
  %1142 = vmatprep.subr.mxu0 0.0
  %1143 = vmatpush2.msra.mxu0 0.0
  %1144 = vmatprep.subr.mxu0 0.0
  %1145 = vmatpush2.msra.mxu0 0.0
  %1146 = vmatprep.subr.mxu0 0.0
  %1147 = vmatpush2.msra.mxu0 0.0
  %1148 = vmatprep.subr.mxu0 0.0
  %1149 = vmatpush2.msra.mxu0 0.0
  %1150 = vmatprep.subr.mxu0 0.0
  %1151 = vmatpush2.msra.mxu0 0.0
  %1152 = vmatprep.subr.mxu0 0.0
  %1153 = vmatpush2.msra.mxu0 0.0
  %1154 = vmatprep.subr.mxu0 0.0
  %1155 = vmatpush2.msra.mxu0 0.0
  %1156 = vmatprep.subr.mxu0 0.0
  %1157 = vmatpush2.msra.mxu0 0.0
  %1158 = vmatprep.subr.mxu0 0.0
  %1159 = vmatpush2.msra.mxu0 0.0
  %1160 = vmatprep.subr.mxu0 0.0
  %1161 = vmatpush2.msra.mxu0 0.0
  %1162 = vmatprep.subr.mxu0 0.0
  %1163 = vmatpush2.msra.mxu0 0.0
  %1164 = vmatprep.subr.mxu0 0.0
  %1165 = vmatpush2.msra.mxu0 0.0
  %1166 = vmatprep.subr.mxu0 0.0
  %1167 = vmatpush2.msra.mxu0 0.0
  %1168 = vmatprep.mubr.f32.mxu0 0.0
  %1169 = vmatmul.mubr.f32.gmra.mxu0 %v1102
  %v1170 = vpop.f32.mrf.mxu0
  %v1171 = vadd.f32 0.0, %v1170
  %v1172 = vpop.f32.mrf.mxu0
  %1173 = vdwg.mxu0
  %v1174 = vld [vmem:[%s1] sm:$0xff]
  %1176 = vset.pattern.permute.xlu0 0
  %1177 = vperm.xlu0 %1176, %v1174
  %v1178 = vpop.permute.xlu0 %1177
  %v1180 = vmul.f32 %v1171, %v1178
  %v1181 = vld [vmem:[%s3 + $0x40] sm:$0xff]
  %v1182 = vld [vmem:[%s3 + $0x48] sm:$0xff]
  %v1183 = vld [vmem:[%s3 + $0x50] sm:$0xff]
  %v1184 = vld [vmem:[%s3 + $0x58] sm:$0xff]
  %v1185 = vld [vmem:[%s3 + $0x60] sm:$0xff]
  %v1186 = vld [vmem:[%s3 + $0x68] sm:$0xff]
  %v1187 = vld [vmem:[%s3 + $0x70] sm:$0xff]
  %v1188 = vld [vmem:[%s3 + $0x78] sm:$0xff]
  %v1189 = vld [vmem:[%s3 + $0x80] sm:$0xff]
  %v1190 = vld [vmem:[%s3 + $0x88] sm:$0xff]
  %v1191 = vld [vmem:[%s3 + $0x90] sm:$0xff]
  %v1192 = vld [vmem:[%s3 + $0x98] sm:$0xff]
  %v1193 = vld [vmem:[%s3 + $0xa0] sm:$0x1]
  %v1194 = vld [vmem:[%s3 + $0xa8] sm:$0xff]
  %v1195 = vld [vmem:[%s3 + $0xb0] sm:$0xff]
  %v1196 = vld [vmem:[%s3 + $0xb8] sm:$0xff]
  %v1197 = vld [vmem:[%s3 + $0xc0] sm:$0xff]
  %v1198 = vld [vmem:[%s3 + $0xc8] sm:$0xff]
  %v1199 = vld [vmem:[%s3 + $0xd0] sm:$0xff]
  %v1200 = vld [vmem:[%s3 + $0xd8] sm:$0xff]
  %v1201 = vld [vmem:[%s3 + $0xe0] sm:$0xff]
  %v1202 = vld [vmem:[%s3 + $0xe8] sm:$0x1]
  %v1204 = vsel %vm93, %v1180, 0
  %1206 = vmatprep.subr.mxu0 0.0
  %1207 = vmatpush1.msra.mxu0 0.0
  %1208 = vmatprep.subr.mxu0 0.0
  %1209 = vmatpush1.msra.mxu0 0.0
  %1210 = vmatprep.subr.mxu0 0.0
  %1211 = vmatpush1.msra.mxu0 0.0
  %1212 = vmatprep.subr.mxu0 0.0
  %1213 = vmatpush1.msra.mxu0 0.0
  %1214 = vmatprep.subr.mxu0 0.0
  %1215 = vmatpush1.msra.mxu0 0.0
  %1216 = vmatprep.subr.mxu0 0.0
  %1217 = vmatpush1.msra.mxu0 0.0
  %1218 = vmatprep.subr.mxu0 0.0
  %1219 = vmatpush1.msra.mxu0 0.0
  %1220 = vmatprep.subr.mxu0 0.0
  %1221 = vmatpush1.msra.mxu0 0.0
  %1222 = vmatprep.subr.mxu0 0.0
  %1223 = vmatpush1.msra.mxu0 %v1192
  %1224 = vmatprep.subr.mxu0 0.0
  %1225 = vmatpush1.msra.mxu0 %v1191
  %1226 = vmatprep.subr.mxu0 0.0
  %1227 = vmatpush1.msra.mxu0 %v1190
  %1228 = vmatprep.subr.mxu0 0.0
  %1229 = vmatpush1.msra.mxu0 %v1189
  %1230 = vmatprep.subr.mxu0 0.0
  %1231 = vmatpush1.msra.mxu0 %v1188
  %1232 = vmatprep.subr.mxu0 0.0
  %1233 = vmatpush1.msra.mxu0 %v1187
  %1234 = vmatprep.subr.mxu0 0.0
  %1235 = vmatpush1.msra.mxu0 %v1186
  %1236 = vmatprep.subr.mxu0 0.0
  %1237 = vmatpush1.msra.mxu0 %v1185
  %1238 = vmatprep.subr.mxu0 0.0
  %1239 = vmatpush2.msra.mxu0 0.0
  %1240 = vmatprep.subr.mxu0 0.0
  %1241 = vmatpush2.msra.mxu0 0.0
  %1242 = vmatprep.subr.mxu0 0.0
  %1243 = vmatpush2.msra.mxu0 0.0
  %1244 = vmatprep.subr.mxu0 0.0
  %1245 = vmatpush2.msra.mxu0 0.0
  %1246 = vmatprep.subr.mxu0 0.0
  %1247 = vmatpush2.msra.mxu0 0.0
  %1248 = vmatprep.subr.mxu0 0.0
  %1249 = vmatpush2.msra.mxu0 0.0
  %1250 = vmatprep.subr.mxu0 0.0
  %1251 = vmatpush2.msra.mxu0 0.0
  %1252 = vmatprep.subr.mxu0 0.0
  %1253 = vmatpush2.msra.mxu0 0.0
  %1254 = vmatprep.subr.mxu0 0.0
  %1255 = vmatpush2.msra.mxu0 0.0
  %1256 = vmatprep.subr.mxu0 0.0
  %1257 = vmatpush2.msra.mxu0 0.0
  %1258 = vmatprep.subr.mxu0 0.0
  %1259 = vmatpush2.msra.mxu0 0.0
  %1260 = vmatprep.subr.mxu0 0.0
  %1261 = vmatpush2.msra.mxu0 0.0
  %1262 = vmatprep.subr.mxu0 0.0
  %1263 = vmatpush2.msra.mxu0 0.0
  %1264 = vmatprep.subr.mxu0 0.0
  %1265 = vmatpush2.msra.mxu0 0.0
  %1266 = vmatprep.subr.mxu0 0.0
  %1267 = vmatpush2.msra.mxu0 0.0
  %1268 = vmatprep.subr.mxu0 0.0
  %1269 = vmatpush2.msra.mxu0 0.0
  %1270 = vmatprep.mubr.f32.mxu0 0.0
  %1271 = vmatmul.mubr.f32.gmra.mxu0 %v1204
  %v1272 = vpop.f32.mrf.mxu0
  %v1273 = vadd.f32 0.0, %v1272
  %v1274 = vpop.f32.mrf.mxu0
  %1275 = vdwg.mxu0
  %1277 = vrot.lane.b32.xlu0 %v1085, 96
  %v1278 = vpop.permute.xlu0 %1277
  %v1279 = vsel %vm223, %v1278, 0
  %1281 = vmatprep.subr.mxu0 0.0
  %1282 = vmatpush1.msra.mxu0 0.0
  %1283 = vmatprep.subr.mxu0 0.0
  %1284 = vmatpush1.msra.mxu0 0.0
  %1285 = vmatprep.subr.mxu0 0.0
  %1286 = vmatpush1.msra.mxu0 0.0
  %1287 = vmatprep.subr.mxu0 0.0
  %1288 = vmatpush1.msra.mxu0 0.0
  %1289 = vmatprep.subr.mxu0 0.0
  %1290 = vmatpush1.msra.mxu0 0.0
  %1291 = vmatprep.subr.mxu0 0.0
  %1292 = vmatpush1.msra.mxu0 0.0
  %1293 = vmatprep.subr.mxu0 0.0
  %1294 = vmatpush1.msra.mxu0 0.0
  %1295 = vmatprep.subr.mxu0 0.0
  %1296 = vmatpush1.msra.mxu0 0.0
  %1297 = vmatprep.subr.mxu0 0.0
  %1298 = vmatpush1.msra.mxu0 0.0
  %1299 = vmatprep.subr.mxu0 0.0
  %1300 = vmatpush1.msra.mxu0 0.0
  %1301 = vmatprep.subr.mxu0 0.0
  %1302 = vmatpush1.msra.mxu0 0.0
  %1303 = vmatprep.subr.mxu0 0.0
  %1304 = vmatpush1.msra.mxu0 0.0
  %1305 = vmatprep.subr.mxu0 0.0
  %1306 = vmatpush1.msra.mxu0 %v1184
  %1307 = vmatprep.subr.mxu0 0.0
  %1308 = vmatpush1.msra.mxu0 %v1183
  %1309 = vmatprep.subr.mxu0 0.0
  %1310 = vmatpush1.msra.mxu0 %v1182
  %1311 = vmatprep.subr.mxu0 0.0
  %1312 = vmatpush1.msra.mxu0 %v1181
  %1313 = vmatprep.subr.mxu0 0.0
  %1314 = vmatpush2.msra.mxu0 0.0
  %1315 = vmatprep.subr.mxu0 0.0
  %1316 = vmatpush2.msra.mxu0 0.0
  %1317 = vmatprep.subr.mxu0 0.0
  %1318 = vmatpush2.msra.mxu0 0.0
  %1319 = vmatprep.subr.mxu0 0.0
  %1320 = vmatpush2.msra.mxu0 0.0
  %1321 = vmatprep.subr.mxu0 0.0
  %1322 = vmatpush2.msra.mxu0 0.0
  %1323 = vmatprep.subr.mxu0 0.0
  %1324 = vmatpush2.msra.mxu0 0.0
  %1325 = vmatprep.subr.mxu0 0.0
  %1326 = vmatpush2.msra.mxu0 0.0
  %1327 = vmatprep.subr.mxu0 0.0
  %1328 = vmatpush2.msra.mxu0 0.0
  %1329 = vmatprep.subr.mxu0 0.0
  %1330 = vmatpush2.msra.mxu0 0.0
  %1331 = vmatprep.subr.mxu0 0.0
  %1332 = vmatpush2.msra.mxu0 0.0
  %1333 = vmatprep.subr.mxu0 0.0
  %1334 = vmatpush2.msra.mxu0 0.0
  %1335 = vmatprep.subr.mxu0 0.0
  %1336 = vmatpush2.msra.mxu0 0.0
  %1337 = vmatprep.subr.mxu0 0.0
  %1338 = vmatpush2.msra.mxu0 0.0
  %1339 = vmatprep.subr.mxu0 0.0
  %1340 = vmatpush2.msra.mxu0 0.0
  %1341 = vmatprep.subr.mxu0 0.0
  %1342 = vmatpush2.msra.mxu0 0.0
  %1343 = vmatprep.subr.mxu0 0.0
  %1344 = vmatpush2.msra.mxu0 0.0
  %1345 = vmatprep.mubr.f32.mxu0 0.0
  %1346 = vmatmul.mubr.f32.gmra.mxu0 %v1279
  %v1347 = vpop.f32.mrf.mxu0
  %v1348 = vadd.f32 %v1273, %v1347
  %v1349 = vpop.f32.mrf.mxu0
  %1350 = vdwg.mxu0
  %v1351 = vlaneseq
  %v1352 = vshrl.u32 %v1351, 7
  %v1353 = vsub.s32 0, %v1352
  %v1354 = vrot.slane %v1193, %v1353
  %v1355 = vadd.f32 %v1348, %v1354
  %v1356 = vtanh.pop %v1355
  %v1357 = vlaneseq
  %v1358 = vshrl.u32 %v1357, 7
  %v1359 = vsub.s32 0, %v1358
  %v1360 = vrot.slane %v1202, %v1359
  %v1362 = vsel %vm93, %v1356, 0
  %1364 = vmatprep.subr.mxu0 0.0
  %1365 = vmatpush1.msra.mxu0 0.0
  %1366 = vmatprep.subr.mxu0 0.0
  %1367 = vmatpush1.msra.mxu0 0.0
  %1368 = vmatprep.subr.mxu0 0.0
  %1369 = vmatpush1.msra.mxu0 0.0
  %1370 = vmatprep.subr.mxu0 0.0
  %1371 = vmatpush1.msra.mxu0 0.0
  %1372 = vmatprep.subr.mxu0 0.0
  %1373 = vmatpush1.msra.mxu0 0.0
  %1374 = vmatprep.subr.mxu0 0.0
  %1375 = vmatpush1.msra.mxu0 0.0
  %1376 = vmatprep.subr.mxu0 0.0
  %1377 = vmatpush1.msra.mxu0 0.0
  %1378 = vmatprep.subr.mxu0 0.0
  %1379 = vmatpush1.msra.mxu0 0.0
  %1380 = vmatprep.subr.mxu0 0.0
  %1381 = vmatpush1.msra.mxu0 %v1201
  %1382 = vmatprep.subr.mxu0 0.0
  %1383 = vmatpush1.msra.mxu0 %v1200
  %1384 = vmatprep.subr.mxu0 0.0
  %1385 = vmatpush1.msra.mxu0 %v1199
  %1386 = vmatprep.subr.mxu0 0.0
  %1387 = vmatpush1.msra.mxu0 %v1198
  %1388 = vmatprep.subr.mxu0 0.0
  %1389 = vmatpush1.msra.mxu0 %v1197
  %1390 = vmatprep.subr.mxu0 0.0
  %1391 = vmatpush1.msra.mxu0 %v1196
  %1392 = vmatprep.subr.mxu0 0.0
  %1393 = vmatpush1.msra.mxu0 %v1195
  %1394 = vmatprep.subr.mxu0 0.0
  %1395 = vmatpush1.msra.mxu0 %v1194
  %1396 = vmatprep.subr.mxu0 0.0
  %1397 = vmatpush2.msra.mxu0 0.0
  %1398 = vmatprep.subr.mxu0 0.0
  %1399 = vmatpush2.msra.mxu0 0.0
  %1400 = vmatprep.subr.mxu0 0.0
  %1401 = vmatpush2.msra.mxu0 0.0
  %1402 = vmatprep.subr.mxu0 0.0
  %1403 = vmatpush2.msra.mxu0 0.0
  %1404 = vmatprep.subr.mxu0 0.0
  %1405 = vmatpush2.msra.mxu0 0.0
  %1406 = vmatprep.subr.mxu0 0.0
  %1407 = vmatpush2.msra.mxu0 0.0
  %1408 = vmatprep.subr.mxu0 0.0
  %1409 = vmatpush2.msra.mxu0 0.0
  %1410 = vmatprep.subr.mxu0 0.0
  %1411 = vmatpush2.msra.mxu0 0.0
  %1412 = vmatprep.subr.mxu0 0.0
  %1413 = vmatpush2.msra.mxu0 0.0
  %1414 = vmatprep.subr.mxu0 0.0
  %1415 = vmatpush2.msra.mxu0 0.0
  %1416 = vmatprep.subr.mxu0 0.0
  %1417 = vmatpush2.msra.mxu0 0.0
  %1418 = vmatprep.subr.mxu0 0.0
  %1419 = vmatpush2.msra.mxu0 0.0
  %1420 = vmatprep.subr.mxu0 0.0
  %1421 = vmatpush2.msra.mxu0 0.0
  %1422 = vmatprep.subr.mxu0 0.0
  %1423 = vmatpush2.msra.mxu0 0.0
  %1424 = vmatprep.subr.mxu0 0.0
  %1425 = vmatpush2.msra.mxu0 0.0
  %1426 = vmatprep.subr.mxu0 0.0
  %1427 = vmatpush2.msra.mxu0 0.0
  %1428 = vmatprep.mubr.f32.mxu0 0.0
  %1429 = vmatmul.mubr.f32.gmra.mxu0 %v1362
  %v1430 = vpop.f32.mrf.mxu0
  %v1431 = vadd.f32 %v1360, %v1430
  %v1432 = vpop.f32.mrf.mxu0
  %1433 = vdwg.mxu0
  %1434 = vst.msk [vmem:[%s4] sm:$0xff] %vm93, %v1431
  // Predicated region
  $region18: #{kerl_forward.1} parent=0 // pred_check
    _
  $region19: #{kerl_forward.1} parent=0 // pred_check_branch
    %1436 = sbr.rel (0) target = $region21
  $region20: #{kerl_forward.1} parent=0 // pred_region
    _
  $region21: #{kerl_forward.1} parent=0 // pred_fallthru
    _
  // Predicated region
  $region22: #{kerl_forward.1} parent=0 // pred_check
    _
  $region23: #{kerl_forward.1} parent=0 // pred_check_branch
    %1438 = sbr.rel (0) target = $region25
  $region24: #{kerl_forward.1} parent=0 // pred_region
    _
  $region25: #{kerl_forward.1} parent=0 // pred_fallthru
    _

</llo_original>
